<compile_context>
chip_gen: v7x
topology: tpu7x:2x2x1
jax: 0.10.0
libtpu: 0.0.40
codegen_flags: <defaults>
</compile_context>

<pallas_src>
import functools
import math

import jax
import jax.numpy as jnp
from jax import lax
from jax.experimental import pallas as pl
from jax.experimental.pallas import tpu as pltpu


# Finite "minus infinity".  It MUST stay finite: masked logits get multiplied by
# c_exp == 0 at padded columns, and -inf * 0 would be NaN while -1e30 * 0 == 0.
_MASK_VALUE = -1e30


def _soft_clip_kernel(scale_ref, zi_ref, zj_ref, row_loss_ref, *,
                      n_valid, n_padded, tm, use_bf16_matmul):
    """Per-row (l1 + l2) contributions for one row tile, stored lane-dense.

    With B = brain_clip rows, BT = brain_clip.T rows, C = clip_clip rows
    (all [tm, n_padded]) and softmax(C) rows summing to 1:
        sum_j log_softmax(B)_ij * softmax(C)_ij
            = sum_j B_ij * c_exp_ij / c_sum_i - (b_max_i + b_lse_i)
    so no NxN softmax / log-softmax matrices are materialized.
    """
    scale = scale_ref[0]                                   # exp(logit_scale), f32 in SMEM
    mm_dtype = jnp.bfloat16 if use_bf16_matmul else zi_ref.dtype

    # Row tile comes from the already-resident full operands (no duplicated inputs).
    start = pl.multiple_of(pl.program_id(0) * tm, tm)
    zi_tile = zi_ref[pl.ds(start, tm), :]
    zj_tile = zj_ref[pl.ds(start, tm), :]

    # Fold the scale into the small [tm, D] operands (much cheaper than scaling the
    # [tm, N] matmul outputs).  Exact for f32 inputs.
    # TODO(synk): for bf16 inputs this rounds the scaled tile back to bf16 (the PyTorch
    # module scales the matmul output instead) -- negligible but not bit-identical.
    zi_s = (zi_tile.astype(jnp.float32) * scale).astype(mm_dtype)
    zj_s = (zj_tile.astype(jnp.float32) * scale).astype(mm_dtype)
    zi_full = zi_ref[...].astype(mm_dtype)
    zj_full = zj_ref[...].astype(mm_dtype)

    # A @ B.T via dot_general (contract hidden dim of both) -> MXU, f32 accumulate.
    dims = (((1,), (1,)), ((), ()))

    # brain_clip rows and clip_clip rows share the RHS z_j: fuse them into one MXU
    # matmul so the z_j weight tiles are pushed once per row tile instead of twice.
    lhs = jnp.concatenate([zi_s, zj_s], axis=0)                       # (2*tm, D)
    bc = lax.dot_general(lhs, zj_full, dims,
                         preferred_element_type=jnp.float32)          # (2*tm, N)
    brain = bc[:tm, :]                                                # rows of brain_clip
    clip = bc[tm:, :]                                                 # rows of clip_clip
    brain_t = lax.dot_general(zj_s, zi_full, dims,
                              preferred_element_type=jnp.float32)     # rows of brain_clip.T

    if n_padded != n_valid:
        # Single additive column-bias (0 valid / -1e30 padded), broadcast-added to the
        # three logit tiles.  Padded z rows are zero, so raw logits there are 0 and the
        # bias pins them to -1e30; exp underflows to exactly 0, and -1e30 * 0 == 0 keeps
        # the s_b / s_bt contractions finite (hence _MASK_VALUE must stay finite).
        col = lax.broadcasted_iota(jnp.int32, (1, n_padded), 1)
        col_bias = jnp.where(col < n_valid, 0.0, _MASK_VALUE).astype(jnp.float32)
        brain = brain + col_bias
        clip = clip + col_bias
        brain_t = brain_t + col_bias

    # Unnormalized softmax of clip_clip rows; normalization deferred to per-row reciprocal.
    c_max = jnp.max(clip, axis=-1, keepdims=True)
    c_exp = jnp.exp(clip - c_max)
    c_sum = jnp.sum(c_exp, axis=-1, keepdims=True)
    inv_c_sum = pl.reciprocal(c_sum, approx=False)         # exact; only tm values

    def max_and_lse(x):
        m = jnp.max(x, axis=-1, keepdims=True)
        lse = jnp.log(jnp.sum(jnp.exp(x - m), axis=-1, keepdims=True))
        return m, lse

    b_max, b_lse = max_and_lse(brain)
    bt_max, bt_lse = max_and_lse(brain_t)

    s_b = jnp.sum(brain * c_exp, axis=-1, keepdims=True)
    s_bt = jnp.sum(brain_t * c_exp, axis=-1, keepdims=True)

    # Per-row: l1_i + l2_i  (each = -(sum_j log_softmax * softmax)).
    row = (b_max + b_lse - s_b * inv_c_sum) + (bt_max + bt_lse - s_bt * inv_c_sum)

    if n_padded != n_valid:
        r = start + lax.broadcasted_iota(jnp.int32, (tm, 1), 0)
        row = jnp.where(r < n_valid, row, 0.0)

    # Lane-dense store: [tm, 1] per-row losses -> the [1, tm] output block.
    row_loss_ref[0, :] = row[:, 0]


def _round_up(x, m):
    return (x + m - 1) // m * m


def _vmem_capacity_bytes():
    default = 64 * 1024 * 1024          # conservative: v7x per-TensorCore VMEM
    try:
        info = pltpu.get_tpu_info()
        cap = getattr(info, "vmem_capacity_bytes", None)
        return int(cap) if cap else default
    except Exception:
        return default


def _estimate_footprint_bytes(tm, n_padded, d, in_itemsize):
    resident = 2 * n_padded * d * in_itemsize     # z_i, z_j (single-buffered, resident)
    temporaries = 6 * tm * n_padded * 4           # fused (2tm,N) result, brain_t, c_exp, slack
    small = 6 * tm * d * 4 + 4 * tm * 4           # scaled tiles, concat LHS, output blocks
    return resident + temporaries + small


def _choose_block_rows(n_padded, d, in_itemsize, vmem_cap):
    budget = int(0.7 * vmem_cap)                  # ~45 MiB on v7x, ~90 MiB on v5e/v6e
    for tm in (512, 256, 128):
        if n_padded % tm != 0:
            continue
        if n_padded // tm < 2:                    # keep >= 2 tiles so both v7x TCs get work
            continue
        if _estimate_footprint_bytes(tm, n_padded, d, in_itemsize) <= budget:
            return tm
    return 128


def soft_clip_loss(z_i, z_j, logit_scale, *, block_rows=None, use_bf16_matmul=False):
    """Pallas implementation of SoftCLIPLoss.forward(z_i, z_j).

    use_bf16_matmul: cast MXU operands to bf16 (f32 accumulation). 2-4x faster matmuls
    on all generations but changes numerics; validate against the reference before use.
    """
    n, d = z_i.shape
    assert z_j.shape == (n, d)

    vmem_cap = _vmem_capacity_bytes()
    in_itemsize = z_i.dtype.itemsize

    if block_rows is not None:
        assert block_rows % 8 == 0, "block_rows must be a multiple of 8"
        tm = block_rows
        n_padded = _round_up(n, tm)
        if n_padded // tm > 1:
            assert tm % 128 == 0, "multi-tile grids need block_rows % 128 == 0"
    elif n < 128:
        tm = _round_up(n, 8)          # single tile; tiny batches don't amortize more tiles
        n_padded = tm
    else:
        n_padded = _round_up(n, 128)
        tm = _choose_block_rows(n_padded, d, in_itemsize, vmem_cap)
    # TODO(synk): for very large N (once even tm=128 + resident z_i/z_j overflow v7x's
    # 64 MiB VMEM, roughly N>=8-16K at D=128) switch to a column-blocked online-softmax
    # (flash-style) variant instead of keeping z_i/z_j fully resident.

    if n_padded != n:
        pad = n_padded - n
        z_i_p = jnp.pad(z_i, ((0, pad), (0, 0)))
        z_j_p = jnp.pad(z_j, ((0, pad), (0, 0)))
    else:
        z_i_p, z_j_p = z_i, z_j

    scale = jnp.exp(logit_scale).reshape((1,)).astype(jnp.float32)
    grid = (n_padded // tm,)

    footprint = _estimate_footprint_bytes(tm, n_padded, d, in_itemsize)
    vmem_limit = int(min(vmem_cap, max(2 * footprint, 32 * 1024 * 1024)))

    kernel = functools.partial(
        _soft_clip_kernel, n_valid=n, n_padded=n_padded, tm=tm,
        use_bf16_matmul=use_bf16_matmul)

    row_losses = pl.pallas_call(
        kernel,
        out_shape=jax.ShapeDtypeStruct((1, n_padded), jnp.float32),
        grid=grid,
        in_specs=[
            pl.BlockSpec(memory_space=pltpu.MemorySpace.SMEM),          # exp(logit_scale)
            pl.BlockSpec((n_padded, d), lambda i: (0, 0),
                         pipeline_mode=pl.Buffered(1)),                 # z_i (resident, 1 buffer)
            pl.BlockSpec((n_padded, d), lambda i: (0, 0),
                         pipeline_mode=pl.Buffered(1)),                 # z_j (resident, 1 buffer)
        ],
        out_specs=pl.BlockSpec((1, tm), lambda i: (0, i)),              # lane-dense row losses
        compiler_params=pltpu.CompilerParams(
            dimension_semantics=("parallel",),                          # row tiles independent
            vmem_limit_bytes=vmem_limit,
        ),
    )(scale, z_i_p, z_j_p)

    # loss = (mean(l1) + mean(l2)) / 2 over the true batch size (padded entries are 0).
    return 0.5 * jnp.sum(row_losses) / jnp.float32(n)


def soft_clip_loss_reference(z_i, z_j, logit_scale):
    """Pure-JAX reference matching the PyTorch module semantics."""
    scale = jnp.exp(logit_scale)
    clip_clip = (z_j @ z_j.T) * scale
    brain_clip = (z_i @ z_j.T) * scale
    c_sm = jax.nn.softmax(clip_clip, axis=-1)
    loss1 = -jnp.mean(jnp.sum(jax.nn.log_softmax(brain_clip, axis=-1) * c_sm, axis=-1))
    loss2 = -jnp.mean(jnp.sum(jax.nn.log_softmax(brain_clip.T, axis=-1) * c_sm, axis=-1))
    return (loss1 + loss2) / 2


if __name__ == "__main__":
    # Deterministic parameter init, as in SoftCLIPLoss.__init__ (temperature=0.04).
    temperature = 0.04
    logit_scale = jnp.array(math.log(1.0 / temperature), dtype=jnp.float32)

    # z_i, z_j are [batch, hidden].  N=200 exercises the multi-tile grid (tm=128,
    # grid=2 -> both v7x cores), the additive column-bias mask, the in-kernel row-tile
    # slicing and the lane-dense output path.
    N, D = 200, 128
    key = jax.random.PRNGKey(0)
    k1, k2 = jax.random.split(key)
    z_i = jax.random.normal(k1, (N, D), dtype=jnp.float32) / jnp.sqrt(jnp.float32(D))
    z_j = jax.random.normal(k2, (N, D), dtype=jnp.float32) / jnp.sqrt(jnp.float32(D))

    loss = soft_clip_loss(z_i, z_j, logit_scale)
    jax.block_until_ready(loss)

    ref = soft_clip_loss_reference(z_i, z_j, logit_scale)
    assert jnp.allclose(loss, ref, atol=1e-3, rtol=1e-3), (loss, ref)

    print("KERNEL_OK")
</pallas_src>

<mosaic_0001>
module attributes {stable_mosaic.version = 11 : i64} {
  func.func @_soft_clip_kernel(%arg0: i32, %arg1: memref<1xf32, #tpu.memory_space<smem>>, %arg2: memref<256x128xf32, #tpu.memory_space<vmem>>, %arg3: memref<256x128xf32, #tpu.memory_space<vmem>>, %arg4: memref<1x128xf32, #tpu.memory_space<vmem>>) attributes {dimension_semantics = [#tpu.dimension_semantics<parallel>], iteration_bounds = array<i64: 2>, scalar_prefetch = 0 : i64, scratch_operands = 0 : i64, tpu.core_type = #tpu.core_type<tc>, window_params = [{transform_indices = @transform_0, window_bounds = array<i64: 1>}, {pipeline_mode = #tpu.pipeline_mode<synchronous>, transform_indices = @transform_1, window_bounds = array<i64: 256, 128>}, {pipeline_mode = #tpu.pipeline_mode<synchronous>, transform_indices = @transform_2, window_bounds = array<i64: 256, 128>}, {transform_indices = @transform_3, window_bounds = array<i64: 1, 128>}]} {
    %c0 = arith.constant 0 : index
    %0 = memref.load %arg1[%c0] : memref<1xf32, #tpu.memory_space<smem>>
    %c128_i32 = arith.constant 128 : i32
    %1 = arith.muli %arg0, %c128_i32 : i32
    %2 = tpu.assume_multiple %1, 128 : i32
    %3 = arith.index_cast %2 : i32 to index
    %c0_0 = arith.constant 0 : index
    %4 = vector.load %arg2[%3, %c0_0] : memref<256x128xf32, #tpu.memory_space<vmem>>, vector<128x128xf32>
    %5 = arith.index_cast %2 : i32 to index
    %c0_1 = arith.constant 0 : index
    %6 = vector.load %arg3[%5, %c0_1] : memref<256x128xf32, #tpu.memory_space<vmem>>, vector<128x128xf32>
    %7 = vector.broadcast %0 : f32 to vector<128x128xf32>
    %8 = arith.mulf %4, %7 : vector<128x128xf32>
    %9 = vector.broadcast %0 : f32 to vector<128x128xf32>
    %10 = arith.mulf %6, %9 : vector<128x128xf32>
    %c0_2 = arith.constant 0 : index
    %c0_3 = arith.constant 0 : index
    %11 = vector.load %arg2[%c0_2, %c0_3] : memref<256x128xf32, #tpu.memory_space<vmem>>, vector<256x128xf32>
    %c0_4 = arith.constant 0 : index
    %c0_5 = arith.constant 0 : index
    %12 = vector.load %arg3[%c0_4, %c0_5] : memref<256x128xf32, #tpu.memory_space<vmem>>, vector<256x128xf32>
    %13 = tpu.concatenate %8, %10 in 0 : vector<128x128xf32>, vector<128x128xf32> -> vector<256x128xf32>
    %cst = arith.constant dense<0.000000e+00> : vector<256x256xf32>
    %14 = tpu.matmul %13, %12, %cst {dimension_numbers = #tpu.dot_dimension_numbers<[1], [1], [0], [0], [0, 0, 1, 0], [], []>} : vector<256x128xf32>, vector<256x128xf32>, vector<256x256xf32> -> vector<256x256xf32>
    %15 = vector.extract_strided_slice %14 {offsets = [0, 0], sizes = [128, 256], strides = [1, 1]} : vector<256x256xf32> to vector<128x256xf32>
    %16 = vector.extract_strided_slice %14 {offsets = [128, 0], sizes = [128, 256], strides = [1, 1]} : vector<256x256xf32> to vector<128x256xf32>
    %cst_6 = arith.constant dense<0.000000e+00> : vector<128x256xf32>
    %17 = tpu.matmul %10, %11, %cst_6 {dimension_numbers = #tpu.dot_dimension_numbers<[1], [1], [0], [0], [0, 0, 1, 0], [], []>} : vector<128x128xf32>, vector<256x128xf32>, vector<128x256xf32> -> vector<128x256xf32>
    %18 = tpu.iota {dimensions = array<i32: 1>} : vector<1x256xi32>
    %c200_i32 = arith.constant 200 : i32
    %19 = vector.broadcast %c200_i32 : i32 to vector<1x256xi32>
    %20 = arith.cmpi slt, %18, %19 : vector<1x256xi32>
    %cst_7 = arith.constant 0.000000e+00 : f32
    %cst_8 = arith.constant -1.000000e+30 : f32
    %21 = vector.broadcast %cst_7 : f32 to vector<1x256xf32>
    %22 = vector.broadcast %cst_8 : f32 to vector<1x256xf32>
    %23 = arith.select %20, %21, %22 : vector<1x256xi1>, vector<1x256xf32>
    %24 = vector.broadcast %23 : vector<1x256xf32> to vector<128x256xf32>
    %25 = arith.addf %15, %24 : vector<128x256xf32>
    %26 = vector.broadcast %23 : vector<1x256xf32> to vector<128x256xf32>
    %27 = arith.addf %16, %26 : vector<128x256xf32>
    %28 = vector.broadcast %23 : vector<1x256xf32> to vector<128x256xf32>
    %29 = arith.addf %17, %28 : vector<128x256xf32>
    %cst_9 = arith.constant dense<0xFF800000> : vector<128xf32>
    %30 = vector.multi_reduction <maximumf>, %27, %cst_9 [1] : vector<128x256xf32> to vector<128xf32>
    %31 = vector.shape_cast %30 : vector<128xf32> to vector<128x1xf32>
    %32 = vector.broadcast %31 : vector<128x1xf32> to vector<128x256xf32>
    %33 = arith.subf %27, %32 : vector<128x256xf32>
    %34 = math.exp %33 : vector<128x256xf32>
    %cst_10 = arith.constant dense<0.000000e+00> : vector<128xf32>
    %35 = vector.multi_reduction <add>, %34, %cst_10 [1] : vector<128x256xf32> to vector<128xf32>
    %36 = vector.shape_cast %35 : vector<128xf32> to vector<128x1xf32>
    %37 = tpu.reciprocal %36 : vector<128x1xf32> -> vector<128x1xf32>
    %cst_11 = arith.constant dense<0xFF800000> : vector<128xf32>
    %38 = vector.multi_reduction <maximumf>, %25, %cst_11 [1] : vector<128x256xf32> to vector<128xf32>
    %39 = vector.shape_cast %38 : vector<128xf32> to vector<128x1xf32>
    %40 = vector.broadcast %39 : vector<128x1xf32> to vector<128x256xf32>
    %41 = arith.subf %25, %40 : vector<128x256xf32>
    %42 = math.exp %41 : vector<128x256xf32>
    %cst_12 = arith.constant dense<0.000000e+00> : vector<128xf32>
    %43 = vector.multi_reduction <add>, %42, %cst_12 [1] : vector<128x256xf32> to vector<128xf32>
    %44 = vector.shape_cast %43 : vector<128xf32> to vector<128x1xf32>
    %45 = math.log %44 : vector<128x1xf32>
    %cst_13 = arith.constant dense<0xFF800000> : vector<128xf32>
    %46 = vector.multi_reduction <maximumf>, %29, %cst_13 [1] : vector<128x256xf32> to vector<128xf32>
    %47 = vector.shape_cast %46 : vector<128xf32> to vector<128x1xf32>
    %48 = vector.broadcast %47 : vector<128x1xf32> to vector<128x256xf32>
    %49 = arith.subf %29, %48 : vector<128x256xf32>
    %50 = math.exp %49 : vector<128x256xf32>
    %cst_14 = arith.constant dense<0.000000e+00> : vector<128xf32>
    %51 = vector.multi_reduction <add>, %50, %cst_14 [1] : vector<128x256xf32> to vector<128xf32>
    %52 = vector.shape_cast %51 : vector<128xf32> to vector<128x1xf32>
    %53 = math.log %52 : vector<128x1xf32>
    %54 = arith.mulf %25, %34 : vector<128x256xf32>
    %cst_15 = arith.constant dense<0.000000e+00> : vector<128xf32>
    %55 = vector.multi_reduction <add>, %54, %cst_15 [1] : vector<128x256xf32> to vector<128xf32>
    %56 = vector.shape_cast %55 : vector<128xf32> to vector<128x1xf32>
    %57 = arith.mulf %29, %34 : vector<128x256xf32>
    %cst_16 = arith.constant dense<0.000000e+00> : vector<128xf32>
    %58 = vector.multi_reduction <add>, %57, %cst_16 [1] : vector<128x256xf32> to vector<128xf32>
    %59 = vector.shape_cast %58 : vector<128xf32> to vector<128x1xf32>
    %60 = arith.addf %39, %45 : vector<128x1xf32>
    %61 = arith.mulf %56, %37 : vector<128x1xf32>
    %62 = arith.subf %60, %61 : vector<128x1xf32>
    %63 = arith.addf %47, %53 : vector<128x1xf32>
    %64 = arith.mulf %59, %37 : vector<128x1xf32>
    %65 = arith.subf %63, %64 : vector<128x1xf32>
    %66 = arith.addf %62, %65 : vector<128x1xf32>
    %67 = tpu.iota {dimensions = array<i32: 0>} : vector<128x1xi32>
    %68 = vector.broadcast %2 : i32 to vector<128x1xi32>
    %69 = arith.addi %68, %67 : vector<128x1xi32>
    %c200_i32_17 = arith.constant 200 : i32
    %70 = vector.broadcast %c200_i32_17 : i32 to vector<128x1xi32>
    %71 = arith.cmpi slt, %69, %70 : vector<128x1xi32>
    %cst_18 = arith.constant 0.000000e+00 : f32
    %72 = vector.broadcast %cst_18 : f32 to vector<128x1xf32>
    %73 = arith.select %71, %66, %72 : vector<128x1xi1>, vector<128x1xf32>
    %74 = vector.shape_cast %73 : vector<128x1xf32> to vector<128xf32>
    %c0_19 = arith.constant 0 : index
    %c0_20 = arith.constant 0 : index
    %75 = vector.load %arg4[%c0_19, %c0_20] : memref<1x128xf32, #tpu.memory_space<vmem>>, vector<1x128xf32>
    %76 = vector.shape_cast %75 : vector<1x128xf32> to vector<128xf32>
    %77 = vector.shape_cast %74 : vector<128xf32> to vector<1x128xf32>
    tpu.vector_store %arg4[%c0_19, %c0_20], %77 {strides = array<i32>} : memref<1x128xf32, #tpu.memory_space<vmem>>, vector<1x128xf32>,
    return
  }
  func.func @transform_0(%arg0: i32) -> i32 {
    %c0_i32 = arith.constant 0 : i32
    %c0_i32_0 = arith.constant 0 : i32
    return %c0_i32 : i32
  }
  func.func @transform_1(%arg0: i32) -> (i32, i32) {
    %c0_i32 = arith.constant 0 : i32
    %c0_i32_0 = arith.constant 0 : i32
    %c0_i32_1 = arith.constant 0 : i32
    return %c0_i32, %c0_i32_0 : i32, i32
  }
  func.func @transform_2(%arg0: i32) -> (i32, i32) {
    %c0_i32 = arith.constant 0 : i32
    %c0_i32_0 = arith.constant 0 : i32
    %c0_i32_1 = arith.constant 0 : i32
    return %c0_i32, %c0_i32_0 : i32, i32
  }
  func.func @transform_3(%arg0: i32) -> (i32, i32) {
    %c0_i32 = arith.constant 0 : i32
    %c0_i32_0 = arith.constant 0 : i32
    return %c0_i32, %arg0 : i32, i32
  }
}

</mosaic_0001>

<llo_original>
// kernel: tpu_custom_call.1
$region0: #{tpu_custom_call.1}
  #allocation0 [shape = 'u32[]', space=smem, size = 0x4, offset = 0x4, fixed_abs, tag = 'smem constant byte address 0x4 - core index']
  #allocation1 [shape = 'u32[144,128]{1,0:T(1,128)}', space=vmem, size = 0x12000, scoped, tag = 'internal scratch']
  #allocation2 [shape = 'f32[1]{0:T(128)S(6)}', space=smem, size = 0x200, scoped, tag = 'scoped memory for tpu_custom_call.1']
  %s0 = inlined_call_operand.<no memory space> [shape: f32[1], index: 0, kind: input, shape index: {}]
  %s1 = inlined_call_operand.hbm [shape: f32[256,128], index: 1, kind: input, shape index: {}]
  %s2 = inlined_call_operand.hbm [shape: f32[256,128], index: 2, kind: input, shape index: {}]
  %s3 = inlined_call_operand.hbm [shape: f32[1,256], index: 3, kind: output, shape index: {}]
  %s4 = sld [smem:[#allocation0]]
  $region53: #{tpu_custom_call.1} parent=0
    _
  %s6 = ssub.s32 1, %s4
  %s7 = scalar_select 0, %s6, %s4
  %8 = sst [smem:[#allocation2]] %s0
  $region1: #{tpu_custom_call.1} parent=0
    #allocation3 [shape = 'u8[131072]{0}', space=vmem, size = 0x20000, scoped, tag = 'input window, operand 1, single buffered']
    #allocation4 [shape = 's32[2]{0}', space=sflag, size = 0x8, scoped, tag = 'scoped memory for tpu_custom_call.1']
    #allocation5 [shape = 's32[2]{0}', space=sflag, size = 0x8, scoped, tag = 'scoped memory for tpu_custom_call.1']
    #allocation6 [shape = 'u8[131072]{0}', space=vmem, size = 0x20000, scoped, tag = 'input window, operand 2, single buffered']
    #allocation7 [shape = 's32[1]{0}', space=sflag, size = 0x4, scoped, tag = 'scoped memory for tpu_custom_call.1']
    #allocation8 [shape = 'u8[1024]{0}', space=vmem, size = 0x400, scoped, tag = 'output window, operand 0']
    %9 = vsyncpa [#allocation4], 0
    %10 = vsyncpa [#allocation7], 0
    %11 = vsyncpa [#allocation5], 0
    %s12 = scalar_lea.sflag [#allocation5], 1
    %13 = vsyncpa %s12, 0
    loop: start=0, step=1, limit=4
    $region2: #{tpu_custom_call.1} parent=1 // loop_pre_header
      _
    $region3: #{tpu_custom_call.1} parent=1 // loop_header
      %s15 = sphi 0, %s19
      %p16 = scmp.ge.s32.totalorder %s15, 4
      %s23 = sphi 0, %s23
      %s25 = sphi 0, %s23
      %s26 = sphi 0, %s25
      %s40 = sphi 0, %s26
      %s44 = sphi 0, %s44
      %s46 = sphi 0, %s44
      %s47 = sphi 0, %s46
      %s61 = sphi 0, %s47
      %s65 = sphi 0, %s65
      %s67 = sphi 0, %s65
      %s68 = sphi 0, %s67
      %s82 = sphi 0, %s68
      %s88 = sphi 0, %s90
      %s91 = sphi 0, %s88
      %s92 = sphi 0, %s91
      %s108 = sphi 0, %s92
    $region4: #{tpu_custom_call.1} parent=1 // loop_header_branch
      %18 = sbr.rel (%p16) target = $region8
    $region5: #{tpu_custom_call.1} parent=1 // loop_body
      %s20 = ssub.s32 %s15, 1
      %s21 = ssub.s32 %s15, 2
      %s22 = sadd.s32 %s15, 1
      %s24 = sadd.s32 %s23, 1
      %p27 = scmp.eq.s32.totalorder %s15, 1
      %p28 = scmp.ne.s32.totalorder %s23, %s25
      %p29 = scmp.eq.s32.totalorder %s15, 0
      %p30 = por %p28, %p29
      %p31 = scmp.ne.s32.totalorder %s23, %s25
      %p32 = scmp.eq.s32.totalorder %s20, 1
      %p33 = por %p31, %p32
      %p34 = scmp.ne.s32.totalorder %s25, %s26
      %p35 = scmp.eq.s32.totalorder %s20, 0
      %p36 = por %p34, %p35
      %p37 = scmp.ne.s32.totalorder %s25, %s26
      %p38 = scmp.eq.s32.totalorder %s21, 1
      %p39 = por %p37, %p38
      %p41 = scmp.ne.s32.totalorder %s26, %s40
      %p42 = scmp.eq.s32.totalorder %s21, 0
      %p43 = por %p41, %p42
      %s45 = sadd.s32 %s44, 1
      %p48 = scmp.eq.s32.totalorder %s15, 1
      %p49 = scmp.ne.s32.totalorder %s44, %s46
      %p50 = scmp.eq.s32.totalorder %s15, 0
      %p51 = por %p49, %p50
      %p52 = scmp.ne.s32.totalorder %s44, %s46
      %p53 = scmp.eq.s32.totalorder %s20, 1
      %p54 = por %p52, %p53
      %p55 = scmp.ne.s32.totalorder %s46, %s47
      %p56 = scmp.eq.s32.totalorder %s20, 0
      %p57 = por %p55, %p56
      %p58 = scmp.ne.s32.totalorder %s46, %s47
      %p59 = scmp.eq.s32.totalorder %s21, 1
      %p60 = por %p58, %p59
      %p62 = scmp.ne.s32.totalorder %s47, %s61
      %p63 = scmp.eq.s32.totalorder %s21, 0
      %p64 = por %p62, %p63
      %s66 = sadd.s32 %s65, 1
      %p69 = scmp.eq.s32.totalorder %s15, 1
      %p70 = scmp.ne.s32.totalorder %s65, %s67
      %p71 = scmp.eq.s32.totalorder %s15, 0
      %p72 = por %p70, %p71
      %p73 = scmp.ne.s32.totalorder %s65, %s67
      %p74 = scmp.eq.s32.totalorder %s20, 1
      %p75 = por %p73, %p74
      %p76 = scmp.ne.s32.totalorder %s67, %s68
      %p77 = scmp.eq.s32.totalorder %s20, 0
      %p78 = por %p76, %p77
      %p79 = scmp.ne.s32.totalorder %s67, %s68
      %p80 = scmp.eq.s32.totalorder %s21, 1
      %p81 = por %p79, %p80
      %p83 = scmp.ne.s32.totalorder %s68, %s82
      %p84 = scmp.eq.s32.totalorder %s21, 0
      %p85 = por %p83, %p84
      %s86 = ssub.s32 %s15, %s22
      %p87 = scmp.eq.s32.totalorder %s86, 0
      %s89 = sadd.s32 %s88, 1
      %s90 = scalar_select %p87, %s88, %s89
      %p93 = pneg %p87
      %p94 = scmp.eq.s32.totalorder %s15, 1
      %p95 = por %p93, %p94
      %p96 = scmp.ne.s32.totalorder %s88, %s91
      %p97 = scmp.eq.s32.totalorder %s15, 0
      %p98 = por %p96, %p97
      %p99 = scmp.ne.s32.totalorder %s88, %s91
      %p100 = scmp.eq.s32.totalorder %s20, 1
      %p101 = por %p99, %p100
      %p102 = scmp.ne.s32.totalorder %s91, %s92
      %p103 = scmp.eq.s32.totalorder %s20, 0
      %p104 = por %p102, %p103
      %p105 = scmp.ne.s32.totalorder %s91, %s92
      %p106 = scmp.eq.s32.totalorder %s21, 1
      %p107 = por %p105, %p106
      %p109 = scmp.ne.s32.totalorder %s92, %s108
      %p110 = scmp.eq.s32.totalorder %s21, 0
      %p111 = por %p109, %p110
      %p112 = scmp.le.s32.totalorder 1, %s15
      %p113 = scmp.lt.s32.totalorder %s15, 3
      %p114 = pnand %p112, %p113
      %p115 = pneg %p114
      // Predicated region
      $region9: #{tpu_custom_call.1} parent=5 // pred_check
        _
      $region10: #{tpu_custom_call.1} parent=5 // pred_check_branch
        %117 = sbr.rel (%p114) target = $region12
      $region11: #{tpu_custom_call.1} parent=5 // pred_region
        %s118 = ssub.s32 %s15, 1
        // Predicated region
        $region13: #{tpu_custom_call.1} parent=11 // pred_check
          %p119 = pneg %p36
        $region14: #{tpu_custom_call.1} parent=11 // pred_check_branch
          %121 = sbr.rel (%p119) target = $region16
        $region15: #{tpu_custom_call.1} parent=11 // pred_region
          _
        $region16: #{tpu_custom_call.1} parent=11 // pred_fallthru
          _
        // Predicated region
        $region17: #{tpu_custom_call.1} parent=11 // pred_check
          %p122 = pneg %p57
        $region18: #{tpu_custom_call.1} parent=11 // pred_check_branch
          %124 = sbr.rel (%p122) target = $region20
        $region19: #{tpu_custom_call.1} parent=11 // pred_region
          %s126 = ssub.s32 4096, 4096
          %127 = vsyncadd [#allocation4], %s126
          %s128 = sshll.u32 [#allocation3], 4
          %s129 = int_to_ptr.vmem [resolvable:$true] %s128
          %134 = dma.hbm_to_vmem [thread:$0]  %s1, 4096, %s129, [#allocation4], 128, 128, 8
        $region20: #{tpu_custom_call.1} parent=11 // pred_fallthru
          _
        // Predicated region
        $region21: #{tpu_custom_call.1} parent=11 // pred_check
          %p135 = pneg %p78
        $region22: #{tpu_custom_call.1} parent=11 // pred_check_branch
          %137 = sbr.rel (%p135) target = $region24
        $region23: #{tpu_custom_call.1} parent=11 // pred_region
          %s139 = ssub.s32 4096, 4096
          %140 = vsyncadd [#allocation7], %s139
          %s141 = sshll.u32 [#allocation6], 4
          %s142 = int_to_ptr.vmem [resolvable:$true] %s141
          %147 = dma.hbm_to_vmem [thread:$0]  %s2, 4096, %s142, [#allocation7], 128, 128, 8
        $region24: #{tpu_custom_call.1} parent=11 // pred_fallthru
          _
      $region12: #{tpu_custom_call.1} parent=5 // pred_fallthru
        _
      %p148 = scmp.lt.s32.totalorder %s15, 2
      // Predicated region
      $region25: #{tpu_custom_call.1} parent=5 // pred_check
        %p149 = pneg %p148
      $region26: #{tpu_custom_call.1} parent=5 // pred_check_branch
        %151 = sbr.rel (%p149) target = $region28
      $region27: #{tpu_custom_call.1} parent=5 // pred_region
        _
      $region28: #{tpu_custom_call.1} parent=5 // pred_fallthru
        _
      %p152 = scmp.le.s32.totalorder 1, %s15
      %p153 = scmp.lt.s32.totalorder %s15, 3
      %p154 = pnand %p152, %p153
      %p155 = pneg %p154
      // Predicated region
      $region29: #{tpu_custom_call.1} parent=5 // pred_check
        _
      $region30: #{tpu_custom_call.1} parent=5 // pred_check_branch
        %157 = sbr.rel (%p154) target = $region32
      $region31: #{tpu_custom_call.1} parent=5 // pred_region
        %s158 = ssub.s32 %s15, 1
        // Predicated region
        $region33: #{tpu_custom_call.1} parent=31 // pred_check
          %p159 = pneg %p57
        $region34: #{tpu_custom_call.1} parent=31 // pred_check_branch
          %161 = sbr.rel (%p159) target = $region36
        $region35: #{tpu_custom_call.1} parent=31 // pred_region
          %162 = dma.done [#allocation4], 4096
        $region36: #{tpu_custom_call.1} parent=31 // pred_fallthru
          _
        // Predicated region
        $region37: #{tpu_custom_call.1} parent=31 // pred_check
          %p163 = pneg %p78
        $region38: #{tpu_custom_call.1} parent=31 // pred_check_branch
          %165 = sbr.rel (%p163) target = $region40
        $region39: #{tpu_custom_call.1} parent=31 // pred_region
          %166 = dma.done [#allocation7], 4096
        $region40: #{tpu_custom_call.1} parent=31 // pred_fallthru
          _
        %p167 = pneg %p36
        %p168 = pneg %p33
        %p169 = pneg %p57
        %p170 = pneg %p54
        %p171 = pneg %p78
        %p172 = pneg %p75
        %p173 = pneg %p104
        %p174 = pneg %p101
        %s175 = sand.u32 %s91, 1
        %s176 = scalar_lea.sflag [#allocation5], %s175
        %s177 = sand.u32 %s91, 1
        %s178 = scalar_lea.vmem [#allocation8], %s177
        %s179 = sld [smem:[#allocation2]]
        %s180 = smul.u32 %s20, 128
        %s181 = scalar_lea.vmem [#allocation3], %s180
        %v182 = vld [vmem:[%s181] sm:$0xff]
        %v183 = vld [vmem:[%s181 + $0x8] sm:$0xff]
        %v184 = vld [vmem:[%s181 + $0x10] sm:$0xff]
        %v185 = vld [vmem:[%s181 + $0x18] sm:$0xff]
        %v186 = vld [vmem:[%s181 + $0x20] sm:$0xff]
        %v187 = vld [vmem:[%s181 + $0x28] sm:$0xff]
        %v188 = vld [vmem:[%s181 + $0x30] sm:$0xff]
        %v189 = vld [vmem:[%s181 + $0x38] sm:$0xff]
        %v190 = vld [vmem:[%s181 + $0x40] sm:$0xff]
        %v191 = vld [vmem:[%s181 + $0x48] sm:$0xff]
        %v192 = vld [vmem:[%s181 + $0x50] sm:$0xff]
        %v193 = vld [vmem:[%s181 + $0x58] sm:$0xff]
        %v194 = vld [vmem:[%s181 + $0x60] sm:$0xff]
        %v195 = vld [vmem:[%s181 + $0x68] sm:$0xff]
        %v196 = vld [vmem:[%s181 + $0x70] sm:$0xff]
        %v197 = vld [vmem:[%s181 + $0x78] sm:$0xff]
        %s198 = scalar_lea.vmem [#allocation6], %s180
        %v199 = vld [vmem:[%s198] sm:$0xff]
        %v200 = vld [vmem:[%s198 + $0x8] sm:$0xff]
        %v201 = vld [vmem:[%s198 + $0x10] sm:$0xff]
        %v202 = vld [vmem:[%s198 + $0x18] sm:$0xff]
        %v203 = vld [vmem:[%s198 + $0x20] sm:$0xff]
        %v204 = vld [vmem:[%s198 + $0x28] sm:$0xff]
        %v205 = vld [vmem:[%s198 + $0x30] sm:$0xff]
        %v206 = vld [vmem:[%s198 + $0x38] sm:$0xff]
        %v207 = vld [vmem:[%s198 + $0x40] sm:$0xff]
        %v208 = vld [vmem:[%s198 + $0x48] sm:$0xff]
        %v209 = vld [vmem:[%s198 + $0x50] sm:$0xff]
        %v210 = vld [vmem:[%s198 + $0x58] sm:$0xff]
        %v211 = vld [vmem:[%s198 + $0x60] sm:$0xff]
        %v212 = vld [vmem:[%s198 + $0x68] sm:$0xff]
        %v213 = vld [vmem:[%s198 + $0x70] sm:$0xff]
        %v214 = vld [vmem:[%s198 + $0x78] sm:$0xff]
        %v215 = vstv %s179
        %v216 = vmul.f32 %v182, %v215
        %v217 = vmul.f32 %v183, %v215
        %v218 = vmul.f32 %v184, %v215
        %v219 = vmul.f32 %v185, %v215
        %v220 = vmul.f32 %v186, %v215
        %v221 = vmul.f32 %v187, %v215
        %v222 = vmul.f32 %v188, %v215
        %v223 = vmul.f32 %v189, %v215
        %v224 = vmul.f32 %v190, %v215
        %v225 = vmul.f32 %v191, %v215
        %v226 = vmul.f32 %v192, %v215
        %v227 = vmul.f32 %v193, %v215
        %v228 = vmul.f32 %v194, %v215
        %v229 = vmul.f32 %v195, %v215
        %v230 = vmul.f32 %v196, %v215
        %v231 = vmul.f32 %v197, %v215
        %v232 = vmul.f32 %v199, %v215
        %v233 = vmul.f32 %v200, %v215
        %v234 = vmul.f32 %v201, %v215
        %v235 = vmul.f32 %v202, %v215
        %v236 = vmul.f32 %v203, %v215
        %v237 = vmul.f32 %v204, %v215
        %v238 = vmul.f32 %v205, %v215
        %v239 = vmul.f32 %v206, %v215
        %v240 = vmul.f32 %v207, %v215
        %v241 = vmul.f32 %v208, %v215
        %v242 = vmul.f32 %v209, %v215
        %v243 = vmul.f32 %v210, %v215
        %v244 = vmul.f32 %v211, %v215
        %v245 = vmul.f32 %v212, %v215
        %v246 = vmul.f32 %v213, %v215
        %v247 = vmul.f32 %v214, %v215
        %v248 = vld [vmem:[#allocation3] sm:$0xff]
        %v249 = vld [vmem:[#allocation3 + $0x8] sm:$0xff]
        %v250 = vld [vmem:[#allocation3 + $0x10] sm:$0xff]
        %v251 = vld [vmem:[#allocation3 + $0x18] sm:$0xff]
        %v252 = vld [vmem:[#allocation3 + $0x20] sm:$0xff]
        %v253 = vld [vmem:[#allocation3 + $0x28] sm:$0xff]
        %v254 = vld [vmem:[#allocation3 + $0x30] sm:$0xff]
        %v255 = vld [vmem:[#allocation3 + $0x38] sm:$0xff]
        %v256 = vld [vmem:[#allocation3 + $0x40] sm:$0xff]
        %v257 = vld [vmem:[#allocation3 + $0x48] sm:$0xff]
        %v258 = vld [vmem:[#allocation3 + $0x50] sm:$0xff]
        %v259 = vld [vmem:[#allocation3 + $0x58] sm:$0xff]
        %v260 = vld [vmem:[#allocation3 + $0x60] sm:$0xff]
        %v261 = vld [vmem:[#allocation3 + $0x68] sm:$0xff]
        %v262 = vld [vmem:[#allocation3 + $0x70] sm:$0xff]
        %v263 = vld [vmem:[#allocation3 + $0x78] sm:$0xff]
        %v264 = vld [vmem:[#allocation3 + $0x80] sm:$0xff]
        %v265 = vld [vmem:[#allocation3 + $0x88] sm:$0xff]
        %v266 = vld [vmem:[#allocation3 + $0x90] sm:$0xff]
        %v267 = vld [vmem:[#allocation3 + $0x98] sm:$0xff]
        %v268 = vld [vmem:[#allocation3 + $0xa0] sm:$0xff]
        %v269 = vld [vmem:[#allocation3 + $0xa8] sm:$0xff]
        %v270 = vld [vmem:[#allocation3 + $0xb0] sm:$0xff]
        %v271 = vld [vmem:[#allocation3 + $0xb8] sm:$0xff]
        %v272 = vld [vmem:[#allocation3 + $0xc0] sm:$0xff]
        %v273 = vld [vmem:[#allocation3 + $0xc8] sm:$0xff]
        %v274 = vld [vmem:[#allocation3 + $0xd0] sm:$0xff]
        %v275 = vld [vmem:[#allocation3 + $0xd8] sm:$0xff]
        %v276 = vld [vmem:[#allocation3 + $0xe0] sm:$0xff]
        %v277 = vld [vmem:[#allocation3 + $0xe8] sm:$0xff]
        %v278 = vld [vmem:[#allocation3 + $0xf0] sm:$0xff]
        %v279 = vld [vmem:[#allocation3 + $0xf8] sm:$0xff]
        %v280 = vld [vmem:[#allocation6] sm:$0xff]
        %v281 = vld [vmem:[#allocation6 + $0x8] sm:$0xff]
        %v282 = vld [vmem:[#allocation6 + $0x10] sm:$0xff]
        %v283 = vld [vmem:[#allocation6 + $0x18] sm:$0xff]
        %v284 = vld [vmem:[#allocation6 + $0x20] sm:$0xff]
        %v285 = vld [vmem:[#allocation6 + $0x28] sm:$0xff]
        %v286 = vld [vmem:[#allocation6 + $0x30] sm:$0xff]
        %v287 = vld [vmem:[#allocation6 + $0x38] sm:$0xff]
        %v288 = vld [vmem:[#allocation6 + $0x40] sm:$0xff]
        %v289 = vld [vmem:[#allocation6 + $0x48] sm:$0xff]
        %v290 = vld [vmem:[#allocation6 + $0x50] sm:$0xff]
        %v291 = vld [vmem:[#allocation6 + $0x58] sm:$0xff]
        %v292 = vld [vmem:[#allocation6 + $0x60] sm:$0xff]
        %v293 = vld [vmem:[#allocation6 + $0x68] sm:$0xff]
        %v294 = vld [vmem:[#allocation6 + $0x70] sm:$0xff]
        %v295 = vld [vmem:[#allocation6 + $0x78] sm:$0xff]
        %v296 = vld [vmem:[#allocation6 + $0x80] sm:$0xff]
        %v297 = vld [vmem:[#allocation6 + $0x88] sm:$0xff]
        %v298 = vld [vmem:[#allocation6 + $0x90] sm:$0xff]
        %v299 = vld [vmem:[#allocation6 + $0x98] sm:$0xff]
        %v300 = vld [vmem:[#allocation6 + $0xa0] sm:$0xff]
        %v301 = vld [vmem:[#allocation6 + $0xa8] sm:$0xff]
        %v302 = vld [vmem:[#allocation6 + $0xb0] sm:$0xff]
        %v303 = vld [vmem:[#allocation6 + $0xb8] sm:$0xff]
        %v304 = vld [vmem:[#allocation6 + $0xc0] sm:$0xff]
        %v305 = vld [vmem:[#allocation6 + $0xc8] sm:$0xff]
        %v306 = vld [vmem:[#allocation6 + $0xd0] sm:$0xff]
        %v307 = vld [vmem:[#allocation6 + $0xd8] sm:$0xff]
        %v308 = vld [vmem:[#allocation6 + $0xe0] sm:$0xff]
        %v309 = vld [vmem:[#allocation6 + $0xe8] sm:$0xff]
        %v310 = vld [vmem:[#allocation6 + $0xf0] sm:$0xff]
        %v311 = vld [vmem:[#allocation6 + $0xf8] sm:$0xff]
        %312 = vmatprep.subr.mxu0 0.0
        %313 = vmatpush1.xpose.msra.mxu0 %v280
        %314 = vmatprep.subr.mxu0 0.0
        %315 = vmatpush1.xpose.msra.mxu0 %v281
        %316 = vmatprep.subr.mxu0 0.0
        %317 = vmatpush1.xpose.msra.mxu0 %v282
        %318 = vmatprep.subr.mxu0 0.0
        %319 = vmatpush1.xpose.msra.mxu0 %v283
        %320 = vmatprep.subr.mxu0 0.0
        %321 = vmatpush1.xpose.msra.mxu0 %v284
        %322 = vmatprep.subr.mxu0 0.0
        %323 = vmatpush1.xpose.msra.mxu0 %v285
        %324 = vmatprep.subr.mxu0 0.0
        %325 = vmatpush1.xpose.msra.mxu0 %v286
        %326 = vmatprep.subr.mxu0 0.0
        %327 = vmatpush1.xpose.msra.mxu0 %v287
        %328 = vmatprep.subr.mxu0 0.0
        %329 = vmatpush1.xpose.msra.mxu0 %v288
        %330 = vmatprep.subr.mxu0 0.0
        %331 = vmatpush1.xpose.msra.mxu0 %v289
        %332 = vmatprep.subr.mxu0 0.0
        %333 = vmatpush1.xpose.msra.mxu0 %v290
        %334 = vmatprep.subr.mxu0 0.0
        %335 = vmatpush1.xpose.msra.mxu0 %v291
        %336 = vmatprep.subr.mxu0 0.0
        %337 = vmatpush1.xpose.msra.mxu0 %v292
        %338 = vmatprep.subr.mxu0 0.0
        %339 = vmatpush1.xpose.msra.mxu0 %v293
        %340 = vmatprep.subr.mxu0 0.0
        %341 = vmatpush1.xpose.msra.mxu0 %v294
        %342 = vmatprep.subr.mxu0 0.0
        %343 = vmatpush1.xpose.msra.mxu0 %v295
        %344 = vmatprep.subr.mxu0 0.0
        %345 = vmatpush1.xpose.msra.mxu0 %v296
        %346 = vmatprep.subr.mxu0 0.0
        %347 = vmatpush1.xpose.msra.mxu0 %v297
        %348 = vmatprep.subr.mxu0 0.0
        %349 = vmatpush1.xpose.msra.mxu0 %v298
        %350 = vmatprep.subr.mxu0 0.0
        %351 = vmatpush1.xpose.msra.mxu0 %v299
        %352 = vmatprep.subr.mxu0 0.0
        %353 = vmatpush1.xpose.msra.mxu0 %v300
        %354 = vmatprep.subr.mxu0 0.0
        %355 = vmatpush1.xpose.msra.mxu0 %v301
        %356 = vmatprep.subr.mxu0 0.0
        %357 = vmatpush1.xpose.msra.mxu0 %v302
        %358 = vmatprep.subr.mxu0 0.0
        %359 = vmatpush1.xpose.msra.mxu0 %v303
        %360 = vmatprep.subr.mxu0 0.0
        %361 = vmatpush1.xpose.msra.mxu0 %v304
        %362 = vmatprep.subr.mxu0 0.0
        %363 = vmatpush1.xpose.msra.mxu0 %v305
        %364 = vmatprep.subr.mxu0 0.0
        %365 = vmatpush1.xpose.msra.mxu0 %v306
        %366 = vmatprep.subr.mxu0 0.0
        %367 = vmatpush1.xpose.msra.mxu0 %v307
        %368 = vmatprep.subr.mxu0 0.0
        %369 = vmatpush1.xpose.msra.mxu0 %v308
        %370 = vmatprep.subr.mxu0 0.0
        %371 = vmatpush1.xpose.msra.mxu0 %v309
        %372 = vmatprep.subr.mxu0 0.0
        %373 = vmatpush1.xpose.msra.mxu0 %v310
        %374 = vmatprep.subr.mxu0 0.0
        %375 = vmatpush1.xpose.msra.mxu0 %v311
        %376 = vmatprep.mubr.f32.mxu0 0.0
        %377 = vmatmul.mubr.f32.gmra.mrb[0].mxu0 %v216
        %v378 = vpop.f32.mrb[0].mxu0
        %v379 = vadd.f32 0.0, %v378
        %v380 = vpop.f32.mrb[0].mxu0
        %v381 = vadd.f32 0.0, %v380
        %382 = vmatprep.mubr.f32.mxu0 0.0
        %383 = vmatmul.mubr.f32.gmra.mrb[0].mxu0 %v217
        %v384 = vpop.f32.mrb[0].mxu0
        %v385 = vadd.f32 0.0, %v384
        %v386 = vpop.f32.mrb[0].mxu0
        %v387 = vadd.f32 0.0, %v386
        %388 = vmatprep.mubr.f32.mxu0 0.0
        %389 = vmatmul.mubr.f32.gmra.mrb[0].mxu0 %v218
        %v390 = vpop.f32.mrb[0].mxu0
        %v391 = vadd.f32 0.0, %v390
        %v392 = vpop.f32.mrb[0].mxu0
        %v393 = vadd.f32 0.0, %v392
        %394 = vmatprep.mubr.f32.mxu0 0.0
        %395 = vmatmul.mubr.f32.gmra.mrb[0].mxu0 %v219
        %v396 = vpop.f32.mrb[0].mxu0
        %v397 = vadd.f32 0.0, %v396
        %v398 = vpop.f32.mrb[0].mxu0
        %v399 = vadd.f32 0.0, %v398
        %400 = vmatprep.mubr.f32.mxu0 0.0
        %401 = vmatmul.mubr.f32.gmra.mrb[0].mxu0 %v220
        %v402 = vpop.f32.mrb[0].mxu0
        %v403 = vadd.f32 0.0, %v402
        %v404 = vpop.f32.mrb[0].mxu0
        %v405 = vadd.f32 0.0, %v404
        %406 = vmatprep.mubr.f32.mxu0 0.0
        %407 = vmatmul.mubr.f32.gmra.mrb[0].mxu0 %v221
        %v408 = vpop.f32.mrb[0].mxu0
        %v409 = vadd.f32 0.0, %v408
        %v410 = vpop.f32.mrb[0].mxu0
        %v411 = vadd.f32 0.0, %v410
        %412 = vmatprep.mubr.f32.mxu0 0.0
        %413 = vmatmul.mubr.f32.gmra.mrb[0].mxu0 %v222
        %v414 = vpop.f32.mrb[0].mxu0
        %v415 = vadd.f32 0.0, %v414
        %v416 = vpop.f32.mrb[0].mxu0
        %v417 = vadd.f32 0.0, %v416
        %418 = vmatprep.mubr.f32.mxu0 0.0
        %419 = vmatmul.mubr.f32.gmra.mrb[0].mxu0 %v223
        %v420 = vpop.f32.mrb[0].mxu0
        %v421 = vadd.f32 0.0, %v420
        %v422 = vpop.f32.mrb[0].mxu0
        %v423 = vadd.f32 0.0, %v422
        %424 = vmatprep.mubr.f32.mxu0 0.0
        %425 = vmatmul.mubr.f32.gmra.mrb[0].mxu0 %v224
        %v426 = vpop.f32.mrb[0].mxu0
        %v427 = vadd.f32 0.0, %v426
        %v428 = vpop.f32.mrb[0].mxu0
        %v429 = vadd.f32 0.0, %v428
        %430 = vmatprep.mubr.f32.mxu0 0.0
        %431 = vmatmul.mubr.f32.gmra.mrb[0].mxu0 %v225
        %v432 = vpop.f32.mrb[0].mxu0
        %v433 = vadd.f32 0.0, %v432
        %v434 = vpop.f32.mrb[0].mxu0
        %v435 = vadd.f32 0.0, %v434
        %436 = vmatprep.mubr.f32.mxu0 0.0
        %437 = vmatmul.mubr.f32.gmra.mrb[0].mxu0 %v226
        %v438 = vpop.f32.mrb[0].mxu0
        %v439 = vadd.f32 0.0, %v438
        %v440 = vpop.f32.mrb[0].mxu0
        %v441 = vadd.f32 0.0, %v440
        %442 = vmatprep.mubr.f32.mxu0 0.0
        %443 = vmatmul.mubr.f32.gmra.mrb[0].mxu0 %v227
        %v444 = vpop.f32.mrb[0].mxu0
        %v445 = vadd.f32 0.0, %v444
        %v446 = vpop.f32.mrb[0].mxu0
        %v447 = vadd.f32 0.0, %v446
        %448 = vmatprep.mubr.f32.mxu0 0.0
        %449 = vmatmul.mubr.f32.gmra.mrb[0].mxu0 %v228
        %v450 = vpop.f32.mrb[0].mxu0
        %v451 = vadd.f32 0.0, %v450
        %v452 = vpop.f32.mrb[0].mxu0
        %v453 = vadd.f32 0.0, %v452
        %454 = vmatprep.mubr.f32.mxu0 0.0
        %455 = vmatmul.mubr.f32.gmra.mrb[0].mxu0 %v229
        %v456 = vpop.f32.mrb[0].mxu0
        %v457 = vadd.f32 0.0, %v456
        %v458 = vpop.f32.mrb[0].mxu0
        %v459 = vadd.f32 0.0, %v458
        %460 = vmatprep.mubr.f32.mxu0 0.0
        %461 = vmatmul.mubr.f32.gmra.mrb[0].mxu0 %v230
        %v462 = vpop.f32.mrb[0].mxu0
        %v463 = vadd.f32 0.0, %v462
        %v464 = vpop.f32.mrb[0].mxu0
        %v465 = vadd.f32 0.0, %v464
        %466 = vmatprep.mubr.f32.mxu0 0.0
        %467 = vmatmul.mubr.f32.gmra.mrb[0].mxu0 %v231
        %v468 = vpop.f32.mrb[0].mxu0
        %v469 = vadd.f32 0.0, %v468
        %v470 = vpop.f32.mrb[0].mxu0
        %v471 = vadd.f32 0.0, %v470
        %472 = vmatprep.mubr.f32.mxu0 0.0
        %473 = vmatmul.mubr.f32.gmra.mrb[0].mxu0 %v232
        %v474 = vpop.f32.mrb[0].mxu0
        %v475 = vadd.f32 0.0, %v474
        %v476 = vpop.f32.mrb[0].mxu0
        %v477 = vadd.f32 0.0, %v476
        %478 = vmatprep.mubr.f32.mxu0 0.0
        %479 = vmatmul.mubr.f32.gmra.mrb[0].mxu0 %v233
        %v480 = vpop.f32.mrb[0].mxu0
        %v481 = vadd.f32 0.0, %v480
        %v482 = vpop.f32.mrb[0].mxu0
        %v483 = vadd.f32 0.0, %v482
        %484 = vmatprep.mubr.f32.mxu0 0.0
        %485 = vmatmul.mubr.f32.gmra.mrb[0].mxu0 %v234
        %v486 = vpop.f32.mrb[0].mxu0
        %v487 = vadd.f32 0.0, %v486
        %v488 = vpop.f32.mrb[0].mxu0
        %v489 = vadd.f32 0.0, %v488
        %490 = vmatprep.mubr.f32.mxu0 0.0
        %491 = vmatmul.mubr.f32.gmra.mrb[0].mxu0 %v235
        %v492 = vpop.f32.mrb[0].mxu0
        %v493 = vadd.f32 0.0, %v492
        %v494 = vpop.f32.mrb[0].mxu0
        %v495 = vadd.f32 0.0, %v494
        %496 = vmatprep.mubr.f32.mxu0 0.0
        %497 = vmatmul.mubr.f32.gmra.mrb[0].mxu0 %v236
        %v498 = vpop.f32.mrb[0].mxu0
        %v499 = vadd.f32 0.0, %v498
        %v500 = vpop.f32.mrb[0].mxu0
        %v501 = vadd.f32 0.0, %v500
        %502 = vmatprep.mubr.f32.mxu0 0.0
        %503 = vmatmul.mubr.f32.gmra.mrb[0].mxu0 %v237
        %v504 = vpop.f32.mrb[0].mxu0
        %v505 = vadd.f32 0.0, %v504
        %v506 = vpop.f32.mrb[0].mxu0
        %v507 = vadd.f32 0.0, %v506
        %508 = vmatprep.mubr.f32.mxu0 0.0
        %509 = vmatmul.mubr.f32.gmra.mrb[0].mxu0 %v238
        %v510 = vpop.f32.mrb[0].mxu0
        %v511 = vadd.f32 0.0, %v510
        %v512 = vpop.f32.mrb[0].mxu0
        %v513 = vadd.f32 0.0, %v512
        %514 = vmatprep.mubr.f32.mxu0 0.0
        %515 = vmatmul.mubr.f32.gmra.mrb[0].mxu0 %v239
        %v516 = vpop.f32.mrb[0].mxu0
        %v517 = vadd.f32 0.0, %v516
        %v518 = vpop.f32.mrb[0].mxu0
        %v519 = vadd.f32 0.0, %v518
        %520 = vmatprep.mubr.f32.mxu0 0.0
        %521 = vmatmul.mubr.f32.gmra.mrb[0].mxu0 %v240
        %v522 = vpop.f32.mrb[0].mxu0
        %v523 = vadd.f32 0.0, %v522
        %v524 = vpop.f32.mrb[0].mxu0
        %v525 = vadd.f32 0.0, %v524
        %526 = vmatprep.mubr.f32.mxu0 0.0
        %527 = vmatmul.mubr.f32.gmra.mrb[0].mxu0 %v241
        %v528 = vpop.f32.mrb[0].mxu0
        %v529 = vadd.f32 0.0, %v528
        %v530 = vpop.f32.mrb[0].mxu0
        %v531 = vadd.f32 0.0, %v530
        %532 = vmatprep.mubr.f32.mxu0 0.0
        %533 = vmatmul.mubr.f32.gmra.mrb[0].mxu0 %v242
        %v534 = vpop.f32.mrb[0].mxu0
        %v535 = vadd.f32 0.0, %v534
        %v536 = vpop.f32.mrb[0].mxu0
        %v537 = vadd.f32 0.0, %v536
        %538 = vmatprep.mubr.f32.mxu0 0.0
        %539 = vmatmul.mubr.f32.gmra.mrb[0].mxu0 %v243
        %v540 = vpop.f32.mrb[0].mxu0
        %v541 = vadd.f32 0.0, %v540
        %v542 = vpop.f32.mrb[0].mxu0
        %v543 = vadd.f32 0.0, %v542
        %544 = vmatprep.mubr.f32.mxu0 0.0
        %545 = vmatmul.mubr.f32.gmra.mrb[0].mxu0 %v244
        %v546 = vpop.f32.mrb[0].mxu0
        %v547 = vadd.f32 0.0, %v546
        %v548 = vpop.f32.mrb[0].mxu0
        %v549 = vadd.f32 0.0, %v548
        %550 = vmatprep.mubr.f32.mxu0 0.0
        %551 = vmatmul.mubr.f32.gmra.mrb[0].mxu0 %v245
        %v552 = vpop.f32.mrb[0].mxu0
        %v553 = vadd.f32 0.0, %v552
        %v554 = vpop.f32.mrb[0].mxu0
        %v555 = vadd.f32 0.0, %v554
        %556 = vmatprep.mubr.f32.mxu0 0.0
        %557 = vmatmul.mubr.f32.gmra.mrb[0].mxu0 %v246
        %v558 = vpop.f32.mrb[0].mxu0
        %v559 = vadd.f32 0.0, %v558
        %v560 = vpop.f32.mrb[0].mxu0
        %v561 = vadd.f32 0.0, %v560
        %562 = vmatprep.mubr.f32.mxu0 0.0
        %563 = vmatmul.mubr.f32.gmra.mrb[0].mxu0 %v247
        %v564 = vpop.f32.mrb[0].mxu0
        %v565 = vadd.f32 0.0, %v564
        %v566 = vpop.f32.mrb[0].mxu0
        %v567 = vadd.f32 0.0, %v566
        %568 = vdwg.mxu0
        %v569 = vlaneseq
        %v570 = vand.u32 %v569, 127
        %v571 = vadd.s32 %v570, 128
        %vm572 = vcmp.lt.s32.totalorder %v570, 200
        %vm573 = vcmp.lt.s32.totalorder %v571, 200
        %v574 = vsel %vm572, 0.0, -1e+30
        %v575 = vsel %vm573, 0.0, -1e+30
        %v576 = vadd.f32 %v379, %v574
        %v577 = vadd.f32 %v381, %v575
        %v578 = vadd.f32 %v385, %v574
        %v579 = vadd.f32 %v387, %v575
        %v580 = vadd.f32 %v391, %v574
        %v581 = vadd.f32 %v393, %v575
        %v582 = vadd.f32 %v397, %v574
        %v583 = vadd.f32 %v399, %v575
        %v584 = vadd.f32 %v403, %v574
        %v585 = vadd.f32 %v405, %v575
        %v586 = vadd.f32 %v409, %v574
        %v587 = vadd.f32 %v411, %v575
        %v588 = vadd.f32 %v415, %v574
        %v589 = vadd.f32 %v417, %v575
        %v590 = vadd.f32 %v421, %v574
        %v591 = vadd.f32 %v423, %v575
        %v592 = vadd.f32 %v427, %v574
        %v593 = vadd.f32 %v429, %v575
        %v594 = vadd.f32 %v433, %v574
        %v595 = vadd.f32 %v435, %v575
        %v596 = vadd.f32 %v439, %v574
        %v597 = vadd.f32 %v441, %v575
        %v598 = vadd.f32 %v445, %v574
        %v599 = vadd.f32 %v447, %v575
        %v600 = vadd.f32 %v451, %v574
        %v601 = vadd.f32 %v453, %v575
        %v602 = vadd.f32 %v457, %v574
        %v603 = vadd.f32 %v459, %v575
        %v604 = vadd.f32 %v463, %v574
        %v605 = vadd.f32 %v465, %v575
        %v606 = vadd.f32 %v469, %v574
        %v607 = vadd.f32 %v471, %v575
        %v608 = vadd.f32 %v475, %v574
        %v609 = vadd.f32 %v477, %v575
        %v610 = vadd.f32 %v481, %v574
        %v611 = vadd.f32 %v483, %v575
        %v612 = vadd.f32 %v487, %v574
        %v613 = vadd.f32 %v489, %v575
        %v614 = vadd.f32 %v493, %v574
        %v615 = vadd.f32 %v495, %v575
        %v616 = vadd.f32 %v499, %v574
        %v617 = vadd.f32 %v501, %v575
        %v618 = vadd.f32 %v505, %v574
        %v619 = vadd.f32 %v507, %v575
        %v620 = vadd.f32 %v511, %v574
        %v621 = vadd.f32 %v513, %v575
        %v622 = vadd.f32 %v517, %v574
        %v623 = vadd.f32 %v519, %v575
        %v624 = vadd.f32 %v523, %v574
        %v625 = vadd.f32 %v525, %v575
        %v626 = vadd.f32 %v529, %v574
        %v627 = vadd.f32 %v531, %v575
        %v628 = vadd.f32 %v535, %v574
        %v629 = vadd.f32 %v537, %v575
        %v630 = vadd.f32 %v541, %v574
        %v631 = vadd.f32 %v543, %v575
        %v632 = vadd.f32 %v547, %v574
        %v633 = vadd.f32 %v549, %v575
        %v634 = vadd.f32 %v553, %v574
        %v635 = vadd.f32 %v555, %v575
        %v636 = vadd.f32 %v559, %v574
        %v637 = vadd.f32 %v561, %v575
        %v638 = vadd.f32 %v565, %v574
        %v639 = vadd.f32 %v567, %v575
        %640 = vmatprep.subr.mxu0 0.0
        %641 = vmatpush1.xpose.msra.mxu0 %v248
        %642 = vmatprep.subr.mxu0 0.0
        %643 = vmatpush1.xpose.msra.mxu0 %v249
        %644 = vmatprep.subr.mxu0 0.0
        %645 = vmatpush1.xpose.msra.mxu0 %v250
        %646 = vmatprep.subr.mxu0 0.0
        %647 = vmatpush1.xpose.msra.mxu0 %v251
        %648 = vmatprep.subr.mxu0 0.0
        %649 = vmatpush1.xpose.msra.mxu0 %v252
        %650 = vmatprep.subr.mxu0 0.0
        %651 = vmatpush1.xpose.msra.mxu0 %v253
        %652 = vmatprep.subr.mxu0 0.0
        %653 = vmatpush1.xpose.msra.mxu0 %v254
        %654 = vmatprep.subr.mxu0 0.0
        %655 = vmatpush1.xpose.msra.mxu0 %v255
        %656 = vmatprep.subr.mxu0 0.0
        %657 = vmatpush1.xpose.msra.mxu0 %v256
        %658 = vmatprep.subr.mxu0 0.0
        %659 = vmatpush1.xpose.msra.mxu0 %v257
        %660 = vmatprep.subr.mxu0 0.0
        %661 = vmatpush1.xpose.msra.mxu0 %v258
        %662 = vmatprep.subr.mxu0 0.0
        %663 = vmatpush1.xpose.msra.mxu0 %v259
        %664 = vmatprep.subr.mxu0 0.0
        %665 = vmatpush1.xpose.msra.mxu0 %v260
        %666 = vmatprep.subr.mxu0 0.0
        %667 = vmatpush1.xpose.msra.mxu0 %v261
        %668 = vmatprep.subr.mxu0 0.0
        %669 = vmatpush1.xpose.msra.mxu0 %v262
        %670 = vmatprep.subr.mxu0 0.0
        %671 = vmatpush1.xpose.msra.mxu0 %v263
        %672 = vmatprep.subr.mxu0 0.0
        %673 = vmatpush1.xpose.msra.mxu0 %v264
        %674 = vmatprep.subr.mxu0 0.0
        %675 = vmatpush1.xpose.msra.mxu0 %v265
        %676 = vmatprep.subr.mxu0 0.0
        %677 = vmatpush1.xpose.msra.mxu0 %v266
        %678 = vmatprep.subr.mxu0 0.0
        %679 = vmatpush1.xpose.msra.mxu0 %v267
        %680 = vmatprep.subr.mxu0 0.0
        %681 = vmatpush1.xpose.msra.mxu0 %v268
        %682 = vmatprep.subr.mxu0 0.0
        %683 = vmatpush1.xpose.msra.mxu0 %v269
        %684 = vmatprep.subr.mxu0 0.0
        %685 = vmatpush1.xpose.msra.mxu0 %v270
        %686 = vmatprep.subr.mxu0 0.0
        %687 = vmatpush1.xpose.msra.mxu0 %v271
        %688 = vmatprep.subr.mxu0 0.0
        %689 = vmatpush1.xpose.msra.mxu0 %v272
        %690 = vmatprep.subr.mxu0 0.0
        %691 = vmatpush1.xpose.msra.mxu0 %v273
        %692 = vmatprep.subr.mxu0 0.0
        %693 = vmatpush1.xpose.msra.mxu0 %v274
        %694 = vmatprep.subr.mxu0 0.0
        %695 = vmatpush1.xpose.msra.mxu0 %v275
        %696 = vmatprep.subr.mxu0 0.0
        %697 = vmatpush1.xpose.msra.mxu0 %v276
        %698 = vmatprep.subr.mxu0 0.0
        %699 = vmatpush1.xpose.msra.mxu0 %v277
        %700 = vmatprep.subr.mxu0 0.0
        %701 = vmatpush1.xpose.msra.mxu0 %v278
        %702 = vmatprep.subr.mxu0 0.0
        %703 = vmatpush1.xpose.msra.mxu0 %v279
        %704 = vmatprep.mubr.f32.mxu0 0.0
        %705 = vmatmul.mubr.f32.gmra.mrb[0].mxu0 %v232
        %v706 = vpop.f32.mrb[0].mxu0
        %v707 = vadd.f32 %v574, %v706
        %v708 = vpop.f32.mrb[0].mxu0
        %v709 = vadd.f32 %v575, %v708
        %710 = vmatprep.mubr.f32.mxu0 0.0
        %711 = vmatmul.mubr.f32.gmra.mrb[0].mxu0 %v233
        %v712 = vpop.f32.mrb[0].mxu0
        %v713 = vadd.f32 %v574, %v712
        %v714 = vpop.f32.mrb[0].mxu0
        %v715 = vadd.f32 %v575, %v714
        %716 = vmatprep.mubr.f32.mxu0 0.0
        %717 = vmatmul.mubr.f32.gmra.mrb[0].mxu0 %v234
        %v718 = vpop.f32.mrb[0].mxu0
        %v719 = vadd.f32 %v574, %v718
        %v720 = vpop.f32.mrb[0].mxu0
        %v721 = vadd.f32 %v575, %v720
        %722 = vmatprep.mubr.f32.mxu0 0.0
        %723 = vmatmul.mubr.f32.gmra.mrb[0].mxu0 %v235
        %v724 = vpop.f32.mrb[0].mxu0
        %v725 = vadd.f32 %v574, %v724
        %v726 = vpop.f32.mrb[0].mxu0
        %v727 = vadd.f32 %v575, %v726
        %728 = vmatprep.mubr.f32.mxu0 0.0
        %729 = vmatmul.mubr.f32.gmra.mrb[0].mxu0 %v236
        %v730 = vpop.f32.mrb[0].mxu0
        %v731 = vadd.f32 %v574, %v730
        %v732 = vpop.f32.mrb[0].mxu0
        %v733 = vadd.f32 %v575, %v732
        %734 = vmatprep.mubr.f32.mxu0 0.0
        %735 = vmatmul.mubr.f32.gmra.mrb[0].mxu0 %v237
        %v736 = vpop.f32.mrb[0].mxu0
        %v737 = vadd.f32 %v574, %v736
        %v738 = vpop.f32.mrb[0].mxu0
        %v739 = vadd.f32 %v575, %v738
        %740 = vmatprep.mubr.f32.mxu0 0.0
        %741 = vmatmul.mubr.f32.gmra.mrb[0].mxu0 %v238
        %v742 = vpop.f32.mrb[0].mxu0
        %v743 = vadd.f32 %v574, %v742
        %v744 = vpop.f32.mrb[0].mxu0
        %v745 = vadd.f32 %v575, %v744
        %746 = vmatprep.mubr.f32.mxu0 0.0
        %747 = vmatmul.mubr.f32.gmra.mrb[0].mxu0 %v239
        %v748 = vpop.f32.mrb[0].mxu0
        %v749 = vadd.f32 %v574, %v748
        %v750 = vpop.f32.mrb[0].mxu0
        %v751 = vadd.f32 %v575, %v750
        %752 = vmatprep.mubr.f32.mxu0 0.0
        %753 = vmatmul.mubr.f32.gmra.mrb[0].mxu0 %v240
        %v754 = vpop.f32.mrb[0].mxu0
        %v755 = vadd.f32 %v574, %v754
        %v756 = vpop.f32.mrb[0].mxu0
        %v757 = vadd.f32 %v575, %v756
        %758 = vmatprep.mubr.f32.mxu0 0.0
        %759 = vmatmul.mubr.f32.gmra.mrb[0].mxu0 %v241
        %v760 = vpop.f32.mrb[0].mxu0
        %v761 = vadd.f32 %v574, %v760
        %v762 = vpop.f32.mrb[0].mxu0
        %v763 = vadd.f32 %v575, %v762
        %764 = vmatprep.mubr.f32.mxu0 0.0
        %765 = vmatmul.mubr.f32.gmra.mrb[0].mxu0 %v242
        %v766 = vpop.f32.mrb[0].mxu0
        %v767 = vadd.f32 %v574, %v766
        %v768 = vpop.f32.mrb[0].mxu0
        %v769 = vadd.f32 %v575, %v768
        %770 = vmatprep.mubr.f32.mxu0 0.0
        %771 = vmatmul.mubr.f32.gmra.mrb[0].mxu0 %v243
        %v772 = vpop.f32.mrb[0].mxu0
        %v773 = vadd.f32 %v574, %v772
        %v774 = vpop.f32.mrb[0].mxu0
        %v775 = vadd.f32 %v575, %v774
        %776 = vmatprep.mubr.f32.mxu0 0.0
        %777 = vmatmul.mubr.f32.gmra.mrb[0].mxu0 %v244
        %v778 = vpop.f32.mrb[0].mxu0
        %v779 = vadd.f32 %v574, %v778
        %v780 = vpop.f32.mrb[0].mxu0
        %v781 = vadd.f32 %v575, %v780
        %782 = vmatprep.mubr.f32.mxu0 0.0
        %783 = vmatmul.mubr.f32.gmra.mrb[0].mxu0 %v245
        %v784 = vpop.f32.mrb[0].mxu0
        %v785 = vadd.f32 %v574, %v784
        %v786 = vpop.f32.mrb[0].mxu0
        %v787 = vadd.f32 %v575, %v786
        %788 = vmatprep.mubr.f32.mxu0 0.0
        %789 = vmatmul.mubr.f32.gmra.mrb[0].mxu0 %v246
        %v790 = vpop.f32.mrb[0].mxu0
        %v791 = vadd.f32 %v574, %v790
        %v792 = vpop.f32.mrb[0].mxu0
        %v793 = vadd.f32 %v575, %v792
        %794 = vmatprep.mubr.f32.mxu0 0.0
        %795 = vmatmul.mubr.f32.gmra.mrb[0].mxu0 %v247
        %v796 = vpop.f32.mrb[0].mxu0
        %v797 = vadd.f32 %v574, %v796
        %v798 = vpop.f32.mrb[0].mxu0
        %v799 = vadd.f32 %v575, %v798
        %800 = vdwg.mxu0
        %v801 = vmax.f32 %v608, %v609
        %802 = vmax.xlane.f32.xlu0 %v801
        %v803 = vpop.xlane.xlu0 %802
        %v804 = vmax.f32 %v610, %v611
        %805 = vmax.xlane.f32.xlu0 %v804
        %v806 = vpop.xlane.xlu0 %805
        %v807 = vmax.f32 %v612, %v613
        %808 = vmax.xlane.f32.xlu0 %v807
        %v809 = vpop.xlane.xlu0 %808
        %v810 = vmax.f32 %v614, %v615
        %811 = vmax.xlane.f32.xlu0 %v810
        %v812 = vpop.xlane.xlu0 %811
        %v813 = vmax.f32 %v616, %v617
        %814 = vmax.xlane.f32.xlu0 %v813
        %v815 = vpop.xlane.xlu0 %814
        %v816 = vmax.f32 %v618, %v619
        %817 = vmax.xlane.f32.xlu0 %v816
        %v818 = vpop.xlane.xlu0 %817
        %v819 = vmax.f32 %v620, %v621
        %820 = vmax.xlane.f32.xlu0 %v819
        %v821 = vpop.xlane.xlu0 %820
        %v822 = vmax.f32 %v622, %v623
        %823 = vmax.xlane.f32.xlu0 %v822
        %v824 = vpop.xlane.xlu0 %823
        %v825 = vmax.f32 %v624, %v625
        %826 = vmax.xlane.f32.xlu0 %v825
        %v827 = vpop.xlane.xlu0 %826
        %v828 = vmax.f32 %v626, %v627
        %829 = vmax.xlane.f32.xlu0 %v828
        %v830 = vpop.xlane.xlu0 %829
        %v831 = vmax.f32 %v628, %v629
        %832 = vmax.xlane.f32.xlu0 %v831
        %v833 = vpop.xlane.xlu0 %832
        %v834 = vmax.f32 %v630, %v631
        %835 = vmax.xlane.f32.xlu0 %v834
        %v836 = vpop.xlane.xlu0 %835
        %v837 = vmax.f32 %v632, %v633
        %838 = vmax.xlane.f32.xlu0 %v837
        %v839 = vpop.xlane.xlu0 %838
        %v840 = vmax.f32 %v634, %v635
        %841 = vmax.xlane.f32.xlu0 %v840
        %v842 = vpop.xlane.xlu0 %841
        %v843 = vmax.f32 %v636, %v637
        %844 = vmax.xlane.f32.xlu0 %v843
        %v845 = vpop.xlane.xlu0 %844
        %v846 = vmax.f32 %v638, %v639
        %847 = vmax.xlane.f32.xlu0 %v846
        %v848 = vpop.xlane.xlu0 %847
        %v849 = vsub.f32 %v608, %v803
        %v850 = vsub.f32 %v609, %v803
        %v851 = vsub.f32 %v610, %v806
        %v852 = vsub.f32 %v611, %v806
        %v853 = vsub.f32 %v612, %v809
        %v854 = vsub.f32 %v613, %v809
        %v855 = vsub.f32 %v614, %v812
        %v856 = vsub.f32 %v615, %v812
        %v857 = vsub.f32 %v616, %v815
        %v858 = vsub.f32 %v617, %v815
        %v859 = vsub.f32 %v618, %v818
        %v860 = vsub.f32 %v619, %v818
        %v861 = vsub.f32 %v620, %v821
        %v862 = vsub.f32 %v621, %v821
        %v863 = vsub.f32 %v622, %v824
        %v864 = vsub.f32 %v623, %v824
        %v865 = vsub.f32 %v624, %v827
        %v866 = vsub.f32 %v625, %v827
        %v867 = vsub.f32 %v626, %v830
        %v868 = vsub.f32 %v627, %v830
        %v869 = vsub.f32 %v628, %v833
        %v870 = vsub.f32 %v629, %v833
        %v871 = vsub.f32 %v630, %v836
        %v872 = vsub.f32 %v631, %v836
        %v873 = vsub.f32 %v632, %v839
        %v874 = vsub.f32 %v633, %v839
        %v875 = vsub.f32 %v634, %v842
        %v876 = vsub.f32 %v635, %v842
        %v877 = vsub.f32 %v636, %v845
        %v878 = vsub.f32 %v637, %v845
        %v879 = vsub.f32 %v638, %v848
        %v880 = vsub.f32 %v639, %v848
        %v881 = vmul.f32 %v849, 1.442695
        %v882 = vpow.pop %v881
        %v883 = vmul.f32 %v850, 1.442695
        %v884 = vpow.pop %v883
        %v885 = vmul.f32 %v851, 1.442695
        %v886 = vpow.pop %v885
        %v887 = vmul.f32 %v852, 1.442695
        %v888 = vpow.pop %v887
        %v889 = vmul.f32 %v853, 1.442695
        %v890 = vpow.pop %v889
        %v891 = vmul.f32 %v854, 1.442695
        %v892 = vpow.pop %v891
        %v893 = vmul.f32 %v855, 1.442695
        %v894 = vpow.pop %v893
        %v895 = vmul.f32 %v856, 1.442695
        %v896 = vpow.pop %v895
        %v897 = vmul.f32 %v857, 1.442695
        %v898 = vpow.pop %v897
        %v899 = vmul.f32 %v858, 1.442695
        %v900 = vpow.pop %v899
        %v901 = vmul.f32 %v859, 1.442695
        %v902 = vpow.pop %v901
        %v903 = vmul.f32 %v860, 1.442695
        %v904 = vpow.pop %v903
        %v905 = vmul.f32 %v861, 1.442695
        %v906 = vpow.pop %v905
        %v907 = vmul.f32 %v862, 1.442695
        %v908 = vpow.pop %v907
        %v909 = vmul.f32 %v863, 1.442695
        %v910 = vpow.pop %v909
        %v911 = vmul.f32 %v864, 1.442695
        %v912 = vpow.pop %v911
        %v913 = vmul.f32 %v865, 1.442695
        %v914 = vpow.pop %v913
        %v915 = vmul.f32 %v866, 1.442695
        %v916 = vpow.pop %v915
        %v917 = vmul.f32 %v867, 1.442695
        %v918 = vpow.pop %v917
        %v919 = vmul.f32 %v868, 1.442695
        %v920 = vpow.pop %v919
        %v921 = vmul.f32 %v869, 1.442695
        %v922 = vpow.pop %v921
        %v923 = vmul.f32 %v870, 1.442695
        %v924 = vpow.pop %v923
        %v925 = vmul.f32 %v871, 1.442695
        %v926 = vpow.pop %v925
        %v927 = vmul.f32 %v872, 1.442695
        %v928 = vpow.pop %v927
        %v929 = vmul.f32 %v873, 1.442695
        %v930 = vpow.pop %v929
        %v931 = vmul.f32 %v874, 1.442695
        %v932 = vpow.pop %v931
        %v933 = vmul.f32 %v875, 1.442695
        %v934 = vpow.pop %v933
        %v935 = vmul.f32 %v876, 1.442695
        %v936 = vpow.pop %v935
        %v937 = vmul.f32 %v877, 1.442695
        %v938 = vpow.pop %v937
        %v939 = vmul.f32 %v878, 1.442695
        %v940 = vpow.pop %v939
        %v941 = vmul.f32 %v879, 1.442695
        %v942 = vpow.pop %v941
        %v943 = vmul.f32 %v880, 1.442695
        %v944 = vpow.pop %v943
        %v945 = vadd.f32 %v882, %v884
        %946 = vadd.xlane.f32.xlu0 %v945
        %v947 = vpop.xlane.xlu0 %946
        %v948 = vadd.f32 %v886, %v888
        %949 = vadd.xlane.f32.xlu0 %v948
        %v950 = vpop.xlane.xlu0 %949
        %v951 = vadd.f32 %v890, %v892
        %952 = vadd.xlane.f32.xlu0 %v951
        %v953 = vpop.xlane.xlu0 %952
        %v954 = vadd.f32 %v894, %v896
        %955 = vadd.xlane.f32.xlu0 %v954
        %v956 = vpop.xlane.xlu0 %955
        %v957 = vadd.f32 %v898, %v900
        %958 = vadd.xlane.f32.xlu0 %v957
        %v959 = vpop.xlane.xlu0 %958
        %v960 = vadd.f32 %v902, %v904
        %961 = vadd.xlane.f32.xlu0 %v960
        %v962 = vpop.xlane.xlu0 %961
        %v963 = vadd.f32 %v906, %v908
        %964 = vadd.xlane.f32.xlu0 %v963
        %v965 = vpop.xlane.xlu0 %964
        %v966 = vadd.f32 %v910, %v912
        %967 = vadd.xlane.f32.xlu0 %v966
        %v968 = vpop.xlane.xlu0 %967
        %v969 = vadd.f32 %v914, %v916
        %970 = vadd.xlane.f32.xlu0 %v969
        %v971 = vpop.xlane.xlu0 %970
        %v972 = vadd.f32 %v918, %v920
        %973 = vadd.xlane.f32.xlu0 %v972
        %v974 = vpop.xlane.xlu0 %973
        %v975 = vadd.f32 %v922, %v924
        %976 = vadd.xlane.f32.xlu0 %v975
        %v977 = vpop.xlane.xlu0 %976
        %v978 = vadd.f32 %v926, %v928
        %979 = vadd.xlane.f32.xlu0 %v978
        %v980 = vpop.xlane.xlu0 %979
        %v981 = vadd.f32 %v930, %v932
        %982 = vadd.xlane.f32.xlu0 %v981
        %v983 = vpop.xlane.xlu0 %982
        %v984 = vadd.f32 %v934, %v936
        %985 = vadd.xlane.f32.xlu0 %v984
        %v986 = vpop.xlane.xlu0 %985
        %v987 = vadd.f32 %v938, %v940
        %988 = vadd.xlane.f32.xlu0 %v987
        %v989 = vpop.xlane.xlu0 %988
        %v990 = vadd.f32 %v942, %v944
        %991 = vadd.xlane.f32.xlu0 %v990
        %v992 = vpop.xlane.xlu0 %991
        %v993 = vrcp.pop %v947
        %v994 = vrcp.pop %v950
        %v995 = vrcp.pop %v953
        %v996 = vrcp.pop %v956
        %v997 = vrcp.pop %v959
        %v998 = vrcp.pop %v962
        %v999 = vrcp.pop %v965
        %v1000 = vrcp.pop %v968
        %v1001 = vrcp.pop %v971
        %v1002 = vrcp.pop %v974
        %v1003 = vrcp.pop %v977
        %v1004 = vrcp.pop %v980
        %v1005 = vrcp.pop %v983
        %v1006 = vrcp.pop %v986
        %v1007 = vrcp.pop %v989
        %v1008 = vrcp.pop %v992
        %v1009 = vmax.f32 %v576, %v577
        %1010 = vmax.xlane.f32.xlu0 %v1009
        %v1011 = vpop.xlane.xlu0 %1010
        %v1012 = vmax.f32 %v578, %v579
        %1013 = vmax.xlane.f32.xlu0 %v1012
        %v1014 = vpop.xlane.xlu0 %1013
        %v1015 = vmax.f32 %v580, %v581
        %1016 = vmax.xlane.f32.xlu0 %v1015
        %v1017 = vpop.xlane.xlu0 %1016
        %v1018 = vmax.f32 %v582, %v583
        %1019 = vmax.xlane.f32.xlu0 %v1018
        %v1020 = vpop.xlane.xlu0 %1019
        %v1021 = vmax.f32 %v584, %v585
        %1022 = vmax.xlane.f32.xlu0 %v1021
        %v1023 = vpop.xlane.xlu0 %1022
        %v1024 = vmax.f32 %v586, %v587
        %1025 = vmax.xlane.f32.xlu0 %v1024
        %v1026 = vpop.xlane.xlu0 %1025
        %v1027 = vmax.f32 %v588, %v589
        %1028 = vmax.xlane.f32.xlu0 %v1027
        %v1029 = vpop.xlane.xlu0 %1028
        %v1030 = vmax.f32 %v590, %v591
        %1031 = vmax.xlane.f32.xlu0 %v1030
        %v1032 = vpop.xlane.xlu0 %1031
        %v1033 = vmax.f32 %v592, %v593
        %1034 = vmax.xlane.f32.xlu0 %v1033
        %v1035 = vpop.xlane.xlu0 %1034
        %v1036 = vmax.f32 %v594, %v595
        %1037 = vmax.xlane.f32.xlu0 %v1036
        %v1038 = vpop.xlane.xlu0 %1037
        %v1039 = vmax.f32 %v596, %v597
        %1040 = vmax.xlane.f32.xlu0 %v1039
        %v1041 = vpop.xlane.xlu0 %1040
        %v1042 = vmax.f32 %v598, %v599
        %1043 = vmax.xlane.f32.xlu0 %v1042
        %v1044 = vpop.xlane.xlu0 %1043
        %v1045 = vmax.f32 %v600, %v601
        %1046 = vmax.xlane.f32.xlu0 %v1045
        %v1047 = vpop.xlane.xlu0 %1046
        %v1048 = vmax.f32 %v602, %v603
        %1049 = vmax.xlane.f32.xlu0 %v1048
        %v1050 = vpop.xlane.xlu0 %1049
        %v1051 = vmax.f32 %v604, %v605
        %1052 = vmax.xlane.f32.xlu0 %v1051
        %v1053 = vpop.xlane.xlu0 %1052
        %v1054 = vmax.f32 %v606, %v607
        %1055 = vmax.xlane.f32.xlu0 %v1054
        %v1056 = vpop.xlane.xlu0 %1055
        %v1057 = vsub.f32 %v576, %v1011
        %v1058 = vsub.f32 %v577, %v1011
        %v1059 = vsub.f32 %v578, %v1014
        %v1060 = vsub.f32 %v579, %v1014
        %v1061 = vsub.f32 %v580, %v1017
        %v1062 = vsub.f32 %v581, %v1017
        %v1063 = vsub.f32 %v582, %v1020
        %v1064 = vsub.f32 %v583, %v1020
        %v1065 = vsub.f32 %v584, %v1023
        %v1066 = vsub.f32 %v585, %v1023
        %v1067 = vsub.f32 %v586, %v1026
        %v1068 = vsub.f32 %v587, %v1026
        %v1069 = vsub.f32 %v588, %v1029
        %v1070 = vsub.f32 %v589, %v1029
        %v1071 = vsub.f32 %v590, %v1032
        %v1072 = vsub.f32 %v591, %v1032
        %v1073 = vsub.f32 %v592, %v1035
        %v1074 = vsub.f32 %v593, %v1035
        %v1075 = vsub.f32 %v594, %v1038
        %v1076 = vsub.f32 %v595, %v1038
        %v1077 = vsub.f32 %v596, %v1041
        %v1078 = vsub.f32 %v597, %v1041
        %v1079 = vsub.f32 %v598, %v1044
        %v1080 = vsub.f32 %v599, %v1044
        %v1081 = vsub.f32 %v600, %v1047
        %v1082 = vsub.f32 %v601, %v1047
        %v1083 = vsub.f32 %v602, %v1050
        %v1084 = vsub.f32 %v603, %v1050
        %v1085 = vsub.f32 %v604, %v1053
        %v1086 = vsub.f32 %v605, %v1053
        %v1087 = vsub.f32 %v606, %v1056
        %v1088 = vsub.f32 %v607, %v1056
        %v1089 = vmul.f32 %v1057, 1.442695
        %v1090 = vpow.pop %v1089
        %v1091 = vmul.f32 %v1058, 1.442695
        %v1092 = vpow.pop %v1091
        %v1093 = vmul.f32 %v1059, 1.442695
        %v1094 = vpow.pop %v1093
        %v1095 = vmul.f32 %v1060, 1.442695
        %v1096 = vpow.pop %v1095
        %v1097 = vmul.f32 %v1061, 1.442695
        %v1098 = vpow.pop %v1097
        %v1099 = vmul.f32 %v1062, 1.442695
        %v1100 = vpow.pop %v1099
        %v1101 = vmul.f32 %v1063, 1.442695
        %v1102 = vpow.pop %v1101
        %v1103 = vmul.f32 %v1064, 1.442695
        %v1104 = vpow.pop %v1103
        %v1105 = vmul.f32 %v1065, 1.442695
        %v1106 = vpow.pop %v1105
        %v1107 = vmul.f32 %v1066, 1.442695
        %v1108 = vpow.pop %v1107
        %v1109 = vmul.f32 %v1067, 1.442695
        %v1110 = vpow.pop %v1109
        %v1111 = vmul.f32 %v1068, 1.442695
        %v1112 = vpow.pop %v1111
        %v1113 = vmul.f32 %v1069, 1.442695
        %v1114 = vpow.pop %v1113
        %v1115 = vmul.f32 %v1070, 1.442695
        %v1116 = vpow.pop %v1115
        %v1117 = vmul.f32 %v1071, 1.442695
        %v1118 = vpow.pop %v1117
        %v1119 = vmul.f32 %v1072, 1.442695
        %v1120 = vpow.pop %v1119
        %v1121 = vmul.f32 %v1073, 1.442695
        %v1122 = vpow.pop %v1121
        %v1123 = vmul.f32 %v1074, 1.442695
        %v1124 = vpow.pop %v1123
        %v1125 = vmul.f32 %v1075, 1.442695
        %v1126 = vpow.pop %v1125
        %v1127 = vmul.f32 %v1076, 1.442695
        %v1128 = vpow.pop %v1127
        %v1129 = vmul.f32 %v1077, 1.442695
        %v1130 = vpow.pop %v1129
        %v1131 = vmul.f32 %v1078, 1.442695
        %v1132 = vpow.pop %v1131
        %v1133 = vmul.f32 %v1079, 1.442695
        %v1134 = vpow.pop %v1133
        %v1135 = vmul.f32 %v1080, 1.442695
        %v1136 = vpow.pop %v1135
        %v1137 = vmul.f32 %v1081, 1.442695
        %v1138 = vpow.pop %v1137
        %v1139 = vmul.f32 %v1082, 1.442695
        %v1140 = vpow.pop %v1139
        %v1141 = vmul.f32 %v1083, 1.442695
        %v1142 = vpow.pop %v1141
        %v1143 = vmul.f32 %v1084, 1.442695
        %v1144 = vpow.pop %v1143
        %v1145 = vmul.f32 %v1085, 1.442695
        %v1146 = vpow.pop %v1145
        %v1147 = vmul.f32 %v1086, 1.442695
        %v1148 = vpow.pop %v1147
        %v1149 = vmul.f32 %v1087, 1.442695
        %v1150 = vpow.pop %v1149
        %v1151 = vmul.f32 %v1088, 1.442695
        %v1152 = vpow.pop %v1151
        %v1153 = vadd.f32 %v1090, %v1092
        %1154 = vadd.xlane.f32.xlu0 %v1153
        %v1155 = vpop.xlane.xlu0 %1154
        %v1156 = vadd.f32 %v1094, %v1096
        %1157 = vadd.xlane.f32.xlu0 %v1156
        %v1158 = vpop.xlane.xlu0 %1157
        %v1159 = vadd.f32 %v1098, %v1100
        %1160 = vadd.xlane.f32.xlu0 %v1159
        %v1161 = vpop.xlane.xlu0 %1160
        %v1162 = vadd.f32 %v1102, %v1104
        %1163 = vadd.xlane.f32.xlu0 %v1162
        %v1164 = vpop.xlane.xlu0 %1163
        %v1165 = vadd.f32 %v1106, %v1108
        %1166 = vadd.xlane.f32.xlu0 %v1165
        %v1167 = vpop.xlane.xlu0 %1166
        %v1168 = vadd.f32 %v1110, %v1112
        %1169 = vadd.xlane.f32.xlu0 %v1168
        %v1170 = vpop.xlane.xlu0 %1169
        %v1171 = vadd.f32 %v1114, %v1116
        %1172 = vadd.xlane.f32.xlu0 %v1171
        %v1173 = vpop.xlane.xlu0 %1172
        %v1174 = vadd.f32 %v1118, %v1120
        %1175 = vadd.xlane.f32.xlu0 %v1174
        %v1176 = vpop.xlane.xlu0 %1175
        %v1177 = vadd.f32 %v1122, %v1124
        %1178 = vadd.xlane.f32.xlu0 %v1177
        %v1179 = vpop.xlane.xlu0 %1178
        %v1180 = vadd.f32 %v1126, %v1128
        %1181 = vadd.xlane.f32.xlu0 %v1180
        %v1182 = vpop.xlane.xlu0 %1181
        %v1183 = vadd.f32 %v1130, %v1132
        %1184 = vadd.xlane.f32.xlu0 %v1183
        %v1185 = vpop.xlane.xlu0 %1184
        %v1186 = vadd.f32 %v1134, %v1136
        %1187 = vadd.xlane.f32.xlu0 %v1186
        %v1188 = vpop.xlane.xlu0 %1187
        %v1189 = vadd.f32 %v1138, %v1140
        %1190 = vadd.xlane.f32.xlu0 %v1189
        %v1191 = vpop.xlane.xlu0 %1190
        %v1192 = vadd.f32 %v1142, %v1144
        %1193 = vadd.xlane.f32.xlu0 %v1192
        %v1194 = vpop.xlane.xlu0 %1193
        %v1195 = vadd.f32 %v1146, %v1148
        %1196 = vadd.xlane.f32.xlu0 %v1195
        %v1197 = vpop.xlane.xlu0 %1196
        %v1198 = vadd.f32 %v1150, %v1152
        %1199 = vadd.xlane.f32.xlu0 %v1198
        %v1200 = vpop.xlane.xlu0 %1199
        %v1201 = vlog2.pop %v1155
        %v1202 = vmul.f32 %v1201, 0.6931472
        %v1203 = vlog2.pop %v1158
        %v1204 = vmul.f32 %v1203, 0.6931472
        %v1205 = vlog2.pop %v1161
        %v1206 = vmul.f32 %v1205, 0.6931472
        %v1207 = vlog2.pop %v1164
        %v1208 = vmul.f32 %v1207, 0.6931472
        %v1209 = vlog2.pop %v1167
        %v1210 = vmul.f32 %v1209, 0.6931472
        %v1211 = vlog2.pop %v1170
        %v1212 = vmul.f32 %v1211, 0.6931472
        %v1213 = vlog2.pop %v1173
        %v1214 = vmul.f32 %v1213, 0.6931472
        %v1215 = vlog2.pop %v1176
        %v1216 = vmul.f32 %v1215, 0.6931472
        %v1217 = vlog2.pop %v1179
        %v1218 = vmul.f32 %v1217, 0.6931472
        %v1219 = vlog2.pop %v1182
        %v1220 = vmul.f32 %v1219, 0.6931472
        %v1221 = vlog2.pop %v1185
        %v1222 = vmul.f32 %v1221, 0.6931472
        %v1223 = vlog2.pop %v1188
        %v1224 = vmul.f32 %v1223, 0.6931472
        %v1225 = vlog2.pop %v1191
        %v1226 = vmul.f32 %v1225, 0.6931472
        %v1227 = vlog2.pop %v1194
        %v1228 = vmul.f32 %v1227, 0.6931472
        %v1229 = vlog2.pop %v1197
        %v1230 = vmul.f32 %v1229, 0.6931472
        %v1231 = vlog2.pop %v1200
        %v1232 = vmul.f32 %v1231, 0.6931472
        %v1233 = vmax.f32 %v707, %v709
        %1234 = vmax.xlane.f32.xlu0 %v1233
        %v1235 = vpop.xlane.xlu0 %1234
        %v1236 = vmax.f32 %v713, %v715
        %1237 = vmax.xlane.f32.xlu0 %v1236
        %v1238 = vpop.xlane.xlu0 %1237
        %v1239 = vmax.f32 %v719, %v721
        %1240 = vmax.xlane.f32.xlu0 %v1239
        %v1241 = vpop.xlane.xlu0 %1240
        %v1242 = vmax.f32 %v725, %v727
        %1243 = vmax.xlane.f32.xlu0 %v1242
        %v1244 = vpop.xlane.xlu0 %1243
        %v1245 = vmax.f32 %v731, %v733
        %1246 = vmax.xlane.f32.xlu0 %v1245
        %v1247 = vpop.xlane.xlu0 %1246
        %v1248 = vmax.f32 %v737, %v739
        %1249 = vmax.xlane.f32.xlu0 %v1248
        %v1250 = vpop.xlane.xlu0 %1249
        %v1251 = vmax.f32 %v743, %v745
        %1252 = vmax.xlane.f32.xlu0 %v1251
        %v1253 = vpop.xlane.xlu0 %1252
        %v1254 = vmax.f32 %v749, %v751
        %1255 = vmax.xlane.f32.xlu0 %v1254
        %v1256 = vpop.xlane.xlu0 %1255
        %v1257 = vmax.f32 %v755, %v757
        %1258 = vmax.xlane.f32.xlu0 %v1257
        %v1259 = vpop.xlane.xlu0 %1258
        %v1260 = vmax.f32 %v761, %v763
        %1261 = vmax.xlane.f32.xlu0 %v1260
        %v1262 = vpop.xlane.xlu0 %1261
        %v1263 = vmax.f32 %v767, %v769
        %1264 = vmax.xlane.f32.xlu0 %v1263
        %v1265 = vpop.xlane.xlu0 %1264
        %v1266 = vmax.f32 %v773, %v775
        %1267 = vmax.xlane.f32.xlu0 %v1266
        %v1268 = vpop.xlane.xlu0 %1267
        %v1269 = vmax.f32 %v779, %v781
        %1270 = vmax.xlane.f32.xlu0 %v1269
        %v1271 = vpop.xlane.xlu0 %1270
        %v1272 = vmax.f32 %v785, %v787
        %1273 = vmax.xlane.f32.xlu0 %v1272
        %v1274 = vpop.xlane.xlu0 %1273
        %v1275 = vmax.f32 %v791, %v793
        %1276 = vmax.xlane.f32.xlu0 %v1275
        %v1277 = vpop.xlane.xlu0 %1276
        %v1278 = vmax.f32 %v797, %v799
        %1279 = vmax.xlane.f32.xlu0 %v1278
        %v1280 = vpop.xlane.xlu0 %1279
        %v1281 = vsub.f32 %v707, %v1235
        %v1282 = vsub.f32 %v709, %v1235
        %v1283 = vsub.f32 %v713, %v1238
        %v1284 = vsub.f32 %v715, %v1238
        %v1285 = vsub.f32 %v719, %v1241
        %v1286 = vsub.f32 %v721, %v1241
        %v1287 = vsub.f32 %v725, %v1244
        %v1288 = vsub.f32 %v727, %v1244
        %v1289 = vsub.f32 %v731, %v1247
        %v1290 = vsub.f32 %v733, %v1247
        %v1291 = vsub.f32 %v737, %v1250
        %v1292 = vsub.f32 %v739, %v1250
        %v1293 = vsub.f32 %v743, %v1253
        %v1294 = vsub.f32 %v745, %v1253
        %v1295 = vsub.f32 %v749, %v1256
        %v1296 = vsub.f32 %v751, %v1256
        %v1297 = vsub.f32 %v755, %v1259
        %v1298 = vsub.f32 %v757, %v1259
        %v1299 = vsub.f32 %v761, %v1262
        %v1300 = vsub.f32 %v763, %v1262
        %v1301 = vsub.f32 %v767, %v1265
        %v1302 = vsub.f32 %v769, %v1265
        %v1303 = vsub.f32 %v773, %v1268
        %v1304 = vsub.f32 %v775, %v1268
        %v1305 = vsub.f32 %v779, %v1271
        %v1306 = vsub.f32 %v781, %v1271
        %v1307 = vsub.f32 %v785, %v1274
        %v1308 = vsub.f32 %v787, %v1274
        %v1309 = vsub.f32 %v791, %v1277
        %v1310 = vsub.f32 %v793, %v1277
        %v1311 = vsub.f32 %v797, %v1280
        %v1312 = vsub.f32 %v799, %v1280
        %v1313 = vmul.f32 %v1281, 1.442695
        %v1314 = vpow.pop %v1313
        %v1315 = vmul.f32 %v1282, 1.442695
        %v1316 = vpow.pop %v1315
        %v1317 = vmul.f32 %v1283, 1.442695
        %v1318 = vpow.pop %v1317
        %v1319 = vmul.f32 %v1284, 1.442695
        %v1320 = vpow.pop %v1319
        %v1321 = vmul.f32 %v1285, 1.442695
        %v1322 = vpow.pop %v1321
        %v1323 = vmul.f32 %v1286, 1.442695
        %v1324 = vpow.pop %v1323
        %v1325 = vmul.f32 %v1287, 1.442695
        %v1326 = vpow.pop %v1325
        %v1327 = vmul.f32 %v1288, 1.442695
        %v1328 = vpow.pop %v1327
        %v1329 = vmul.f32 %v1289, 1.442695
        %v1330 = vpow.pop %v1329
        %v1331 = vmul.f32 %v1290, 1.442695
        %v1332 = vpow.pop %v1331
        %v1333 = vmul.f32 %v1291, 1.442695
        %v1334 = vpow.pop %v1333
        %v1335 = vmul.f32 %v1292, 1.442695
        %v1336 = vpow.pop %v1335
        %v1337 = vmul.f32 %v1293, 1.442695
        %v1338 = vpow.pop %v1337
        %v1339 = vmul.f32 %v1294, 1.442695
        %v1340 = vpow.pop %v1339
        %v1341 = vmul.f32 %v1295, 1.442695
        %v1342 = vpow.pop %v1341
        %v1343 = vmul.f32 %v1296, 1.442695
        %v1344 = vpow.pop %v1343
        %v1345 = vmul.f32 %v1297, 1.442695
        %v1346 = vpow.pop %v1345
        %v1347 = vmul.f32 %v1298, 1.442695
        %v1348 = vpow.pop %v1347
        %v1349 = vmul.f32 %v1299, 1.442695
        %v1350 = vpow.pop %v1349
        %v1351 = vmul.f32 %v1300, 1.442695
        %v1352 = vpow.pop %v1351
        %v1353 = vmul.f32 %v1301, 1.442695
        %v1354 = vpow.pop %v1353
        %v1355 = vmul.f32 %v1302, 1.442695
        %v1356 = vpow.pop %v1355
        %v1357 = vmul.f32 %v1303, 1.442695
        %v1358 = vpow.pop %v1357
        %v1359 = vmul.f32 %v1304, 1.442695
        %v1360 = vpow.pop %v1359
        %v1361 = vmul.f32 %v1305, 1.442695
        %v1362 = vpow.pop %v1361
        %v1363 = vmul.f32 %v1306, 1.442695
        %v1364 = vpow.pop %v1363
        %v1365 = vmul.f32 %v1307, 1.442695
        %v1366 = vpow.pop %v1365
        %v1367 = vmul.f32 %v1308, 1.442695
        %v1368 = vpow.pop %v1367
        %v1369 = vmul.f32 %v1309, 1.442695
        %v1370 = vpow.pop %v1369
        %v1371 = vmul.f32 %v1310, 1.442695
        %v1372 = vpow.pop %v1371
        %v1373 = vmul.f32 %v1311, 1.442695
        %v1374 = vpow.pop %v1373
        %v1375 = vmul.f32 %v1312, 1.442695
        %v1376 = vpow.pop %v1375
        %v1377 = vadd.f32 %v1314, %v1316
        %1378 = vadd.xlane.f32.xlu0 %v1377
        %v1379 = vpop.xlane.xlu0 %1378
        %v1380 = vadd.f32 %v1318, %v1320
        %1381 = vadd.xlane.f32.xlu0 %v1380
        %v1382 = vpop.xlane.xlu0 %1381
        %v1383 = vadd.f32 %v1322, %v1324
        %1384 = vadd.xlane.f32.xlu0 %v1383
        %v1385 = vpop.xlane.xlu0 %1384
        %v1386 = vadd.f32 %v1326, %v1328
        %1387 = vadd.xlane.f32.xlu0 %v1386
        %v1388 = vpop.xlane.xlu0 %1387
        %v1389 = vadd.f32 %v1330, %v1332
        %1390 = vadd.xlane.f32.xlu0 %v1389
        %v1391 = vpop.xlane.xlu0 %1390
        %v1392 = vadd.f32 %v1334, %v1336
        %1393 = vadd.xlane.f32.xlu0 %v1392
        %v1394 = vpop.xlane.xlu0 %1393
        %v1395 = vadd.f32 %v1338, %v1340
        %1396 = vadd.xlane.f32.xlu0 %v1395
        %v1397 = vpop.xlane.xlu0 %1396
        %v1398 = vadd.f32 %v1342, %v1344
        %1399 = vadd.xlane.f32.xlu0 %v1398
        %v1400 = vpop.xlane.xlu0 %1399
        %v1401 = vadd.f32 %v1346, %v1348
        %1402 = vadd.xlane.f32.xlu0 %v1401
        %v1403 = vpop.xlane.xlu0 %1402
        %v1404 = vadd.f32 %v1350, %v1352
        %1405 = vadd.xlane.f32.xlu0 %v1404
        %v1406 = vpop.xlane.xlu0 %1405
        %v1407 = vadd.f32 %v1354, %v1356
        %1408 = vadd.xlane.f32.xlu0 %v1407
        %v1409 = vpop.xlane.xlu0 %1408
        %v1410 = vadd.f32 %v1358, %v1360
        %1411 = vadd.xlane.f32.xlu0 %v1410
        %v1412 = vpop.xlane.xlu0 %1411
        %v1413 = vadd.f32 %v1362, %v1364
        %1414 = vadd.xlane.f32.xlu0 %v1413
        %v1415 = vpop.xlane.xlu0 %1414
        %v1416 = vadd.f32 %v1366, %v1368
        %1417 = vadd.xlane.f32.xlu0 %v1416
        %v1418 = vpop.xlane.xlu0 %1417
        %v1419 = vadd.f32 %v1370, %v1372
        %1420 = vadd.xlane.f32.xlu0 %v1419
        %v1421 = vpop.xlane.xlu0 %1420
        %v1422 = vadd.f32 %v1374, %v1376
        %1423 = vadd.xlane.f32.xlu0 %v1422
        %v1424 = vpop.xlane.xlu0 %1423
        %v1425 = vlog2.pop %v1379
        %v1426 = vmul.f32 %v1425, 0.6931472
        %v1427 = vlog2.pop %v1382
        %v1428 = vmul.f32 %v1427, 0.6931472
        %v1429 = vlog2.pop %v1385
        %v1430 = vmul.f32 %v1429, 0.6931472
        %v1431 = vlog2.pop %v1388
        %v1432 = vmul.f32 %v1431, 0.6931472
        %v1433 = vlog2.pop %v1391
        %v1434 = vmul.f32 %v1433, 0.6931472
        %v1435 = vlog2.pop %v1394
        %v1436 = vmul.f32 %v1435, 0.6931472
        %v1437 = vlog2.pop %v1397
        %v1438 = vmul.f32 %v1437, 0.6931472
        %v1439 = vlog2.pop %v1400
        %v1440 = vmul.f32 %v1439, 0.6931472
        %v1441 = vlog2.pop %v1403
        %v1442 = vmul.f32 %v1441, 0.6931472
        %v1443 = vlog2.pop %v1406
        %v1444 = vmul.f32 %v1443, 0.6931472
        %v1445 = vlog2.pop %v1409
        %v1446 = vmul.f32 %v1445, 0.6931472
        %v1447 = vlog2.pop %v1412
        %v1448 = vmul.f32 %v1447, 0.6931472
        %v1449 = vlog2.pop %v1415
        %v1450 = vmul.f32 %v1449, 0.6931472
        %v1451 = vlog2.pop %v1418
        %v1452 = vmul.f32 %v1451, 0.6931472
        %v1453 = vlog2.pop %v1421
        %v1454 = vmul.f32 %v1453, 0.6931472
        %v1455 = vlog2.pop %v1424
        %v1456 = vmul.f32 %v1455, 0.6931472
        %v1457 = vmul.f32 %v576, %v882
        %v1458 = vmul.f32 %v577, %v884
        %v1459 = vmul.f32 %v578, %v886
        %v1460 = vmul.f32 %v579, %v888
        %v1461 = vmul.f32 %v580, %v890
        %v1462 = vmul.f32 %v581, %v892
        %v1463 = vmul.f32 %v582, %v894
        %v1464 = vmul.f32 %v583, %v896
        %v1465 = vmul.f32 %v584, %v898
        %v1466 = vmul.f32 %v585, %v900
        %v1467 = vmul.f32 %v586, %v902
        %v1468 = vmul.f32 %v587, %v904
        %v1469 = vmul.f32 %v588, %v906
        %v1470 = vmul.f32 %v589, %v908
        %v1471 = vmul.f32 %v590, %v910
        %v1472 = vmul.f32 %v591, %v912
        %v1473 = vmul.f32 %v592, %v914
        %v1474 = vmul.f32 %v593, %v916
        %v1475 = vmul.f32 %v594, %v918
        %v1476 = vmul.f32 %v595, %v920
        %v1477 = vmul.f32 %v596, %v922
        %v1478 = vmul.f32 %v597, %v924
        %v1479 = vmul.f32 %v598, %v926
        %v1480 = vmul.f32 %v599, %v928
        %v1481 = vmul.f32 %v600, %v930
        %v1482 = vmul.f32 %v601, %v932
        %v1483 = vmul.f32 %v602, %v934
        %v1484 = vmul.f32 %v603, %v936
        %v1485 = vmul.f32 %v604, %v938
        %v1486 = vmul.f32 %v605, %v940
        %v1487 = vmul.f32 %v606, %v942
        %v1488 = vmul.f32 %v607, %v944
        %v1489 = vadd.f32 %v1457, %v1458
        %1490 = vadd.xlane.f32.xlu0 %v1489
        %v1491 = vpop.xlane.xlu0 %1490
        %v1492 = vadd.f32 %v1459, %v1460
        %1493 = vadd.xlane.f32.xlu0 %v1492
        %v1494 = vpop.xlane.xlu0 %1493
        %v1495 = vadd.f32 %v1461, %v1462
        %1496 = vadd.xlane.f32.xlu0 %v1495
        %v1497 = vpop.xlane.xlu0 %1496
        %v1498 = vadd.f32 %v1463, %v1464
        %1499 = vadd.xlane.f32.xlu0 %v1498
        %v1500 = vpop.xlane.xlu0 %1499
        %v1501 = vadd.f32 %v1465, %v1466
        %1502 = vadd.xlane.f32.xlu0 %v1501
        %v1503 = vpop.xlane.xlu0 %1502
        %v1504 = vadd.f32 %v1467, %v1468
        %1505 = vadd.xlane.f32.xlu0 %v1504
        %v1506 = vpop.xlane.xlu0 %1505
        %v1507 = vadd.f32 %v1469, %v1470
        %1508 = vadd.xlane.f32.xlu0 %v1507
        %v1509 = vpop.xlane.xlu0 %1508
        %v1510 = vadd.f32 %v1471, %v1472
        %1511 = vadd.xlane.f32.xlu0 %v1510
        %v1512 = vpop.xlane.xlu0 %1511
        %v1513 = vadd.f32 %v1473, %v1474
        %1514 = vadd.xlane.f32.xlu0 %v1513
        %v1515 = vpop.xlane.xlu0 %1514
        %v1516 = vadd.f32 %v1475, %v1476
        %1517 = vadd.xlane.f32.xlu0 %v1516
        %v1518 = vpop.xlane.xlu0 %1517
        %v1519 = vadd.f32 %v1477, %v1478
        %1520 = vadd.xlane.f32.xlu0 %v1519
        %v1521 = vpop.xlane.xlu0 %1520
        %v1522 = vadd.f32 %v1479, %v1480
        %1523 = vadd.xlane.f32.xlu0 %v1522
        %v1524 = vpop.xlane.xlu0 %1523
        %v1525 = vadd.f32 %v1481, %v1482
        %1526 = vadd.xlane.f32.xlu0 %v1525
        %v1527 = vpop.xlane.xlu0 %1526
        %v1528 = vadd.f32 %v1483, %v1484
        %1529 = vadd.xlane.f32.xlu0 %v1528
        %v1530 = vpop.xlane.xlu0 %1529
        %v1531 = vadd.f32 %v1485, %v1486
        %1532 = vadd.xlane.f32.xlu0 %v1531
        %v1533 = vpop.xlane.xlu0 %1532
        %v1534 = vadd.f32 %v1487, %v1488
        %1535 = vadd.xlane.f32.xlu0 %v1534
        %v1536 = vpop.xlane.xlu0 %1535
        %v1537 = vmul.f32 %v707, %v882
        %v1538 = vmul.f32 %v709, %v884
        %v1539 = vmul.f32 %v713, %v886
        %v1540 = vmul.f32 %v715, %v888
        %v1541 = vmul.f32 %v719, %v890
        %v1542 = vmul.f32 %v721, %v892
        %v1543 = vmul.f32 %v725, %v894
        %v1544 = vmul.f32 %v727, %v896
        %v1545 = vmul.f32 %v731, %v898
        %v1546 = vmul.f32 %v733, %v900
        %v1547 = vmul.f32 %v737, %v902
        %v1548 = vmul.f32 %v739, %v904
        %v1549 = vmul.f32 %v743, %v906
        %v1550 = vmul.f32 %v745, %v908
        %v1551 = vmul.f32 %v749, %v910
        %v1552 = vmul.f32 %v751, %v912
        %v1553 = vmul.f32 %v755, %v914
        %v1554 = vmul.f32 %v757, %v916
        %v1555 = vmul.f32 %v761, %v918
        %v1556 = vmul.f32 %v763, %v920
        %v1557 = vmul.f32 %v767, %v922
        %v1558 = vmul.f32 %v769, %v924
        %v1559 = vmul.f32 %v773, %v926
        %v1560 = vmul.f32 %v775, %v928
        %v1561 = vmul.f32 %v779, %v930
        %v1562 = vmul.f32 %v781, %v932
        %v1563 = vmul.f32 %v785, %v934
        %v1564 = vmul.f32 %v787, %v936
        %v1565 = vmul.f32 %v791, %v938
        %v1566 = vmul.f32 %v793, %v940
        %v1567 = vmul.f32 %v797, %v942
        %v1568 = vmul.f32 %v799, %v944
        %v1569 = vadd.f32 %v1537, %v1538
        %1570 = vadd.xlane.f32.xlu0 %v1569
        %v1571 = vpop.xlane.xlu0 %1570
        %v1572 = vadd.f32 %v1539, %v1540
        %1573 = vadd.xlane.f32.xlu0 %v1572
        %v1574 = vpop.xlane.xlu0 %1573
        %v1575 = vadd.f32 %v1541, %v1542
        %1576 = vadd.xlane.f32.xlu0 %v1575
        %v1577 = vpop.xlane.xlu0 %1576
        %v1578 = vadd.f32 %v1543, %v1544
        %1579 = vadd.xlane.f32.xlu0 %v1578
        %v1580 = vpop.xlane.xlu0 %1579
        %v1581 = vadd.f32 %v1545, %v1546
        %1582 = vadd.xlane.f32.xlu0 %v1581
        %v1583 = vpop.xlane.xlu0 %1582
        %v1584 = vadd.f32 %v1547, %v1548
        %1585 = vadd.xlane.f32.xlu0 %v1584
        %v1586 = vpop.xlane.xlu0 %1585
        %v1587 = vadd.f32 %v1549, %v1550
        %1588 = vadd.xlane.f32.xlu0 %v1587
        %v1589 = vpop.xlane.xlu0 %1588
        %v1590 = vadd.f32 %v1551, %v1552
        %1591 = vadd.xlane.f32.xlu0 %v1590
        %v1592 = vpop.xlane.xlu0 %1591
        %v1593 = vadd.f32 %v1553, %v1554
        %1594 = vadd.xlane.f32.xlu0 %v1593
        %v1595 = vpop.xlane.xlu0 %1594
        %v1596 = vadd.f32 %v1555, %v1556
        %1597 = vadd.xlane.f32.xlu0 %v1596
        %v1598 = vpop.xlane.xlu0 %1597
        %v1599 = vadd.f32 %v1557, %v1558
        %1600 = vadd.xlane.f32.xlu0 %v1599
        %v1601 = vpop.xlane.xlu0 %1600
        %v1602 = vadd.f32 %v1559, %v1560
        %1603 = vadd.xlane.f32.xlu0 %v1602
        %v1604 = vpop.xlane.xlu0 %1603
        %v1605 = vadd.f32 %v1561, %v1562
        %1606 = vadd.xlane.f32.xlu0 %v1605
        %v1607 = vpop.xlane.xlu0 %1606
        %v1608 = vadd.f32 %v1563, %v1564
        %1609 = vadd.xlane.f32.xlu0 %v1608
        %v1610 = vpop.xlane.xlu0 %1609
        %v1611 = vadd.f32 %v1565, %v1566
        %1612 = vadd.xlane.f32.xlu0 %v1611
        %v1613 = vpop.xlane.xlu0 %1612
        %v1614 = vadd.f32 %v1567, %v1568
        %1615 = vadd.xlane.f32.xlu0 %v1614
        %v1616 = vpop.xlane.xlu0 %1615
        %v1617 = vadd.f32 %v1011, %v1202
        %v1618 = vadd.f32 %v1014, %v1204
        %v1619 = vadd.f32 %v1017, %v1206
        %v1620 = vadd.f32 %v1020, %v1208
        %v1621 = vadd.f32 %v1023, %v1210
        %v1622 = vadd.f32 %v1026, %v1212
        %v1623 = vadd.f32 %v1029, %v1214
        %v1624 = vadd.f32 %v1032, %v1216
        %v1625 = vadd.f32 %v1035, %v1218
        %v1626 = vadd.f32 %v1038, %v1220
        %v1627 = vadd.f32 %v1041, %v1222
        %v1628 = vadd.f32 %v1044, %v1224
        %v1629 = vadd.f32 %v1047, %v1226
        %v1630 = vadd.f32 %v1050, %v1228
        %v1631 = vadd.f32 %v1053, %v1230
        %v1632 = vadd.f32 %v1056, %v1232
        %v1633 = vmul.f32 %v1491, %v993
        %v1634 = vmul.f32 %v1494, %v994
        %v1635 = vmul.f32 %v1497, %v995
        %v1636 = vmul.f32 %v1500, %v996
        %v1637 = vmul.f32 %v1503, %v997
        %v1638 = vmul.f32 %v1506, %v998
        %v1639 = vmul.f32 %v1509, %v999
        %v1640 = vmul.f32 %v1512, %v1000
        %v1641 = vmul.f32 %v1515, %v1001
        %v1642 = vmul.f32 %v1518, %v1002
        %v1643 = vmul.f32 %v1521, %v1003
        %v1644 = vmul.f32 %v1524, %v1004
        %v1645 = vmul.f32 %v1527, %v1005
        %v1646 = vmul.f32 %v1530, %v1006
        %v1647 = vmul.f32 %v1533, %v1007
        %v1648 = vmul.f32 %v1536, %v1008
        %v1649 = vsub.f32 %v1617, %v1633
        %v1650 = vsub.f32 %v1618, %v1634
        %v1651 = vsub.f32 %v1619, %v1635
        %v1652 = vsub.f32 %v1620, %v1636
        %v1653 = vsub.f32 %v1621, %v1637
        %v1654 = vsub.f32 %v1622, %v1638
        %v1655 = vsub.f32 %v1623, %v1639
        %v1656 = vsub.f32 %v1624, %v1640
        %v1657 = vsub.f32 %v1625, %v1641
        %v1658 = vsub.f32 %v1626, %v1642
        %v1659 = vsub.f32 %v1627, %v1643
        %v1660 = vsub.f32 %v1628, %v1644
        %v1661 = vsub.f32 %v1629, %v1645
        %v1662 = vsub.f32 %v1630, %v1646
        %v1663 = vsub.f32 %v1631, %v1647
        %v1664 = vsub.f32 %v1632, %v1648
        %v1665 = vadd.f32 %v1235, %v1426
        %v1666 = vadd.f32 %v1238, %v1428
        %v1667 = vadd.f32 %v1241, %v1430
        %v1668 = vadd.f32 %v1244, %v1432
        %v1669 = vadd.f32 %v1247, %v1434
        %v1670 = vadd.f32 %v1250, %v1436
        %v1671 = vadd.f32 %v1253, %v1438
        %v1672 = vadd.f32 %v1256, %v1440
        %v1673 = vadd.f32 %v1259, %v1442
        %v1674 = vadd.f32 %v1262, %v1444
        %v1675 = vadd.f32 %v1265, %v1446
        %v1676 = vadd.f32 %v1268, %v1448
        %v1677 = vadd.f32 %v1271, %v1450
        %v1678 = vadd.f32 %v1274, %v1452
        %v1679 = vadd.f32 %v1277, %v1454
        %v1680 = vadd.f32 %v1280, %v1456
        %v1681 = vmul.f32 %v1571, %v993
        %v1682 = vmul.f32 %v1574, %v994
        %v1683 = vmul.f32 %v1577, %v995
        %v1684 = vmul.f32 %v1580, %v996
        %v1685 = vmul.f32 %v1583, %v997
        %v1686 = vmul.f32 %v1586, %v998
        %v1687 = vmul.f32 %v1589, %v999
        %v1688 = vmul.f32 %v1592, %v1000
        %v1689 = vmul.f32 %v1595, %v1001
        %v1690 = vmul.f32 %v1598, %v1002
        %v1691 = vmul.f32 %v1601, %v1003
        %v1692 = vmul.f32 %v1604, %v1004
        %v1693 = vmul.f32 %v1607, %v1005
        %v1694 = vmul.f32 %v1610, %v1006
        %v1695 = vmul.f32 %v1613, %v1007
        %v1696 = vmul.f32 %v1616, %v1008
        %v1697 = vsub.f32 %v1665, %v1681
        %v1698 = vsub.f32 %v1666, %v1682
        %v1699 = vsub.f32 %v1667, %v1683
        %v1700 = vsub.f32 %v1668, %v1684
        %v1701 = vsub.f32 %v1669, %v1685
        %v1702 = vsub.f32 %v1670, %v1686
        %v1703 = vsub.f32 %v1671, %v1687
        %v1704 = vsub.f32 %v1672, %v1688
        %v1705 = vsub.f32 %v1673, %v1689
        %v1706 = vsub.f32 %v1674, %v1690
        %v1707 = vsub.f32 %v1675, %v1691
        %v1708 = vsub.f32 %v1676, %v1692
        %v1709 = vsub.f32 %v1677, %v1693
        %v1710 = vsub.f32 %v1678, %v1694
        %v1711 = vsub.f32 %v1679, %v1695
        %v1712 = vsub.f32 %v1680, %v1696
        %v1713 = vadd.f32 %v1649, %v1697
        %v1714 = vadd.f32 %v1650, %v1698
        %v1715 = vadd.f32 %v1651, %v1699
        %v1716 = vadd.f32 %v1652, %v1700
        %v1717 = vadd.f32 %v1653, %v1701
        %v1718 = vadd.f32 %v1654, %v1702
        %v1719 = vadd.f32 %v1655, %v1703
        %v1720 = vadd.f32 %v1656, %v1704
        %v1721 = vadd.f32 %v1657, %v1705
        %v1722 = vadd.f32 %v1658, %v1706
        %v1723 = vadd.f32 %v1659, %v1707
        %v1724 = vadd.f32 %v1660, %v1708
        %v1725 = vadd.f32 %v1661, %v1709
        %v1726 = vadd.f32 %v1662, %v1710
        %v1727 = vadd.f32 %v1663, %v1711
        %v1728 = vadd.f32 %v1664, %v1712
        %v1729 = vlaneseq
        %v1730 = vshrl.u32 %v1729, 7
        %v1731 = vadd.s32 %v1730, 8
        %v1732 = vadd.s32 %v1730, 16
        %v1733 = vadd.s32 %v1730, 24
        %v1734 = vadd.s32 %v1730, 32
        %v1735 = vadd.s32 %v1730, 40
        %v1736 = vadd.s32 %v1730, 48
        %v1737 = vadd.s32 %v1730, 56
        %v1738 = vadd.s32 %v1730, 64
        %v1739 = vadd.s32 %v1730, 72
        %v1740 = vadd.s32 %v1730, 80
        %v1741 = vadd.s32 %v1730, 88
        %v1742 = vadd.s32 %v1730, 96
        %v1743 = vadd.s32 %v1730, 104
        %v1744 = vadd.s32 %v1730, 112
        %v1745 = vadd.s32 %v1730, 120
        %v1746 = vstv %s180
        %v1747 = vadd.s32 %v1746, %v1730
        %v1748 = vadd.s32 %v1746, %v1731
        %v1749 = vadd.s32 %v1746, %v1732
        %v1750 = vadd.s32 %v1746, %v1733
        %v1751 = vadd.s32 %v1746, %v1734
        %v1752 = vadd.s32 %v1746, %v1735
        %v1753 = vadd.s32 %v1746, %v1736
        %v1754 = vadd.s32 %v1746, %v1737
        %v1755 = vadd.s32 %v1746, %v1738
        %v1756 = vadd.s32 %v1746, %v1739
        %v1757 = vadd.s32 %v1746, %v1740
        %v1758 = vadd.s32 %v1746, %v1741
        %v1759 = vadd.s32 %v1746, %v1742
        %v1760 = vadd.s32 %v1746, %v1743
        %v1761 = vadd.s32 %v1746, %v1744
        %v1762 = vadd.s32 %v1746, %v1745
        %vm1763 = vcmp.lt.s32.totalorder %v1747, 200
        %vm1764 = vcmp.lt.s32.totalorder %v1748, 200
        %vm1765 = vcmp.lt.s32.totalorder %v1749, 200
        %vm1766 = vcmp.lt.s32.totalorder %v1750, 200
        %vm1767 = vcmp.lt.s32.totalorder %v1751, 200
        %vm1768 = vcmp.lt.s32.totalorder %v1752, 200
        %vm1769 = vcmp.lt.s32.totalorder %v1753, 200
        %vm1770 = vcmp.lt.s32.totalorder %v1754, 200
        %vm1771 = vcmp.lt.s32.totalorder %v1755, 200
        %vm1772 = vcmp.lt.s32.totalorder %v1756, 200
        %vm1773 = vcmp.lt.s32.totalorder %v1757, 200
        %vm1774 = vcmp.lt.s32.totalorder %v1758, 200
        %vm1775 = vcmp.lt.s32.totalorder %v1759, 200
        %vm1776 = vcmp.lt.s32.totalorder %v1760, 200
        %vm1777 = vcmp.lt.s32.totalorder %v1761, 200
        %vm1778 = vcmp.lt.s32.totalorder %v1762, 200
        %v1779 = vsel %vm1763, %v1713, 0.0
        %v1780 = vsel %vm1764, %v1714, 0.0
        %v1781 = vsel %vm1765, %v1715, 0.0
        %v1782 = vsel %vm1766, %v1716, 0.0
        %v1783 = vsel %vm1767, %v1717, 0.0
        %v1784 = vsel %vm1768, %v1718, 0.0
        %v1785 = vsel %vm1769, %v1719, 0.0
        %v1786 = vsel %vm1770, %v1720, 0.0
        %v1787 = vsel %vm1771, %v1721, 0.0
        %v1788 = vsel %vm1772, %v1722, 0.0
        %v1789 = vsel %vm1773, %v1723, 0.0
        %v1790 = vsel %vm1774, %v1724, 0.0
        %v1791 = vsel %vm1775, %v1725, 0.0
        %v1792 = vsel %vm1776, %v1726, 0.0
        %v1793 = vsel %vm1777, %v1727, 0.0
        %v1794 = vsel %vm1778, %v1728, 0.0
        %v1811 = vlaneseq
        %v1812 = vshrl.u32 %v1811, 7
        %v1813 = vsub.s32 %v570, %v1812
        %v1814 = vrot.slane %v1779, %v1813
        %v1815 = vadd.s32 %v570, 4294967288
        %v1816 = vlaneseq
        %v1817 = vshrl.u32 %v1816, 7
        %v1818 = vsub.s32 %v1815, %v1817
        %v1819 = vrot.slane %v1780, %v1818
        %vm1820 = vcmask 130112
        %v1821 = vsel %vm1820, %v1819, %v1814
        %v1822 = vadd.s32 %v570, 4294967280
        %v1823 = vlaneseq
        %v1824 = vshrl.u32 %v1823, 7
        %v1825 = vsub.s32 %v1822, %v1824
        %v1826 = vrot.slane %v1781, %v1825
        %vm1827 = vcmask 195712
        %v1828 = vsel %vm1827, %v1826, %v1821
        %v1829 = vadd.s32 %v570, 4294967272
        %v1830 = vlaneseq
        %v1831 = vshrl.u32 %v1830, 7
        %v1832 = vsub.s32 %v1829, %v1831
        %v1833 = vrot.slane %v1782, %v1832
        %vm1834 = vcmask 261312
        %v1835 = vsel %vm1834, %v1833, %v1828
        %v1836 = vadd.s32 %v570, 4294967264
        %v1837 = vlaneseq
        %v1838 = vshrl.u32 %v1837, 7
        %v1839 = vsub.s32 %v1836, %v1838
        %v1840 = vrot.slane %v1783, %v1839
        %vm1841 = vcmask 326912
        %v1842 = vsel %vm1841, %v1840, %v1835
        %v1843 = vadd.s32 %v570, 4294967256
        %v1844 = vlaneseq
        %v1845 = vshrl.u32 %v1844, 7
        %v1846 = vsub.s32 %v1843, %v1845
        %v1847 = vrot.slane %v1784, %v1846
        %vm1848 = vcmask 392512
        %v1849 = vsel %vm1848, %v1847, %v1842
        %v1850 = vadd.s32 %v570, 4294967248
        %v1851 = vlaneseq
        %v1852 = vshrl.u32 %v1851, 7
        %v1853 = vsub.s32 %v1850, %v1852
        %v1854 = vrot.slane %v1785, %v1853
        %vm1855 = vcmask 458112
        %v1856 = vsel %vm1855, %v1854, %v1849
        %v1857 = vadd.s32 %v570, 4294967240
        %v1858 = vlaneseq
        %v1859 = vshrl.u32 %v1858, 7
        %v1860 = vsub.s32 %v1857, %v1859
        %v1861 = vrot.slane %v1786, %v1860
        %vm1862 = vcmask 523712
        %v1863 = vsel %vm1862, %v1861, %v1856
        %v1864 = vadd.s32 %v570, 4294967232
        %v1865 = vlaneseq
        %v1866 = vshrl.u32 %v1865, 7
        %v1867 = vsub.s32 %v1864, %v1866
        %v1868 = vrot.slane %v1787, %v1867
        %vm1869 = vcmask 589312
        %v1870 = vsel %vm1869, %v1868, %v1863
        %v1871 = vadd.s32 %v570, 4294967224
        %v1872 = vlaneseq
        %v1873 = vshrl.u32 %v1872, 7
        %v1874 = vsub.s32 %v1871, %v1873
        %v1875 = vrot.slane %v1788, %v1874
        %vm1876 = vcmask 654912
        %v1877 = vsel %vm1876, %v1875, %v1870
        %v1878 = vadd.s32 %v570, 4294967216
        %v1879 = vlaneseq
        %v1880 = vshrl.u32 %v1879, 7
        %v1881 = vsub.s32 %v1878, %v1880
        %v1882 = vrot.slane %v1789, %v1881
        %vm1883 = vcmask 720512
        %v1884 = vsel %vm1883, %v1882, %v1877
        %v1885 = vadd.s32 %v570, 4294967208
        %v1886 = vlaneseq
        %v1887 = vshrl.u32 %v1886, 7
        %v1888 = vsub.s32 %v1885, %v1887
        %v1889 = vrot.slane %v1790, %v1888
        %vm1890 = vcmask 786112
        %v1891 = vsel %vm1890, %v1889, %v1884
        %v1892 = vadd.s32 %v570, 4294967200
        %v1893 = vlaneseq
        %v1894 = vshrl.u32 %v1893, 7
        %v1895 = vsub.s32 %v1892, %v1894
        %v1896 = vrot.slane %v1791, %v1895
        %vm1897 = vcmask 851712
        %v1898 = vsel %vm1897, %v1896, %v1891
        %v1899 = vadd.s32 %v570, 4294967192
        %v1900 = vlaneseq
        %v1901 = vshrl.u32 %v1900, 7
        %v1902 = vsub.s32 %v1899, %v1901
        %v1903 = vrot.slane %v1792, %v1902
        %vm1904 = vcmask 917312
        %v1905 = vsel %vm1904, %v1903, %v1898
        %v1906 = vadd.s32 %v570, 4294967184
        %v1907 = vlaneseq
        %v1908 = vshrl.u32 %v1907, 7
        %v1909 = vsub.s32 %v1906, %v1908
        %v1910 = vrot.slane %v1793, %v1909
        %vm1911 = vcmask 982912
        %v1912 = vsel %vm1911, %v1910, %v1905
        %v1913 = vadd.s32 %v570, 4294967176
        %v1914 = vlaneseq
        %v1915 = vshrl.u32 %v1914, 7
        %v1916 = vsub.s32 %v1913, %v1915
        %v1917 = vrot.slane %v1794, %v1916
        %vm1918 = vcmask 1048512
        %v1919 = vsel %vm1918, %v1917, %v1912
        %1921 = vst [vmem:[%s178] sm:$0x1] %v1919
        %s1922 = sand.u32 %s91, 1
        %s1923 = scalar_lea.sflag [#allocation5], %s1922
        %s1924 = sand.u32 %s91, 1
        %s1925 = scalar_lea.vmem [#allocation8], %s1924
        // Predicated region
        $region41: #{tpu_custom_call.1} parent=31 // pred_check
          %p1926 = pneg %p101
        $region42: #{tpu_custom_call.1} parent=31 // pred_check_branch
          %1928 = sbr.rel (%p1926) target = $region44
        $region43: #{tpu_custom_call.1} parent=31 // pred_region
          %s1930 = ssub.s32 16, 16
          %1931 = vsyncadd %s1923, %s1930
          %s1932 = smul.addr %s20, 16
          %s1933 = scalar_lea.hbm %s3, %s1932
          %s1935 = sshll.u32 %s1925, 4
          %s1936 = int_to_ptr.vmem [resolvable:$true] %s1935
          %1938 = dma.vmem_to_hbm [thread:$0]  %s1936, 16, %s1933, %s1923
        $region44: #{tpu_custom_call.1} parent=31 // pred_fallthru
          _
      $region32: #{tpu_custom_call.1} parent=5 // pred_fallthru
        _
      %p1939 = scmp.le.s32.totalorder 2, %s15
      // Predicated region
      $region45: #{tpu_custom_call.1} parent=5 // pred_check
        %p1940 = pneg %p1939
      $region46: #{tpu_custom_call.1} parent=5 // pred_check_branch
        %1942 = sbr.rel (%p1940) target = $region48
      $region47: #{tpu_custom_call.1} parent=5 // pred_region
        %s1943 = ssub.s32 %s15, 2
        // Predicated region
        $region49: #{tpu_custom_call.1} parent=47 // pred_check
          %p1944 = pneg %p107
        $region50: #{tpu_custom_call.1} parent=47 // pred_check_branch
          %1946 = sbr.rel (%p1944) target = $region52
        $region51: #{tpu_custom_call.1} parent=47 // pred_region
          %s1947 = sand.u32 %s92, 1
          %s1948 = scalar_lea.sflag [#allocation5], %s1947
          %s1949 = sand.u32 %s92, 1
          %s1950 = scalar_lea.vmem [#allocation8], %s1949
          %1951 = dma.done %s1948, 16
        $region52: #{tpu_custom_call.1} parent=47 // pred_fallthru
          _
      $region48: #{tpu_custom_call.1} parent=5 // pred_fallthru
        _
    $region6: #{tpu_custom_call.1} parent=1 // loop_footer
      %s19 = sadd.s32 1, %s15
    $region7: #{tpu_custom_call.1} parent=1 // loop_footer_branch
      %14 = sbr.rel target = $region3
    $region8: #{tpu_custom_call.1} parent=1 // loop_exit
      _
    %1952 = vsyncpa [#allocation4], 1
    %s1953 = scalar_lea.sflag [#allocation4], 1
    %1954 = vsyncpa %s1953, 1
    %1955 = vsyncpa [#allocation7], 1
    %1956 = vsyncpa [#allocation5], 1
    %s1957 = scalar_lea.sflag [#allocation5], 1
    %1958 = vsyncpa %s1957, 1

</llo_original>
